<compile_context>
chip_gen: v5e
topology: v5e:2x2
jax: 0.10.0
libtpu: 0.0.40
codegen_flags: <defaults>
</compile_context>

<pallas_src>
import functools

import jax
import jax.numpy as jnp
from jax import lax
from jax.experimental import pallas as pl
from jax.experimental.pallas import tpu as pltpu


_ACC_LANES = 128  # one lane-dense accumulator row; lanes 0..5 carry the sums
# lane 0: sum |mel diff| over masked frames (already reduced over n_mels)
# lane 1: number of masked mel frames
# lane 2: sum (pitch diff)^2 over masked frames
# lane 3: sum (energy diff)^2 over masked frames
# lane 4: sum (log-duration diff)^2 over masked tokens
# lane 5: number of masked src tokens


def _rup(x, m):
    return (x + m - 1) // m * m


def _sum11(x2d):
    """Reduce a 2-D array to shape (1, 1), staying in vector form."""
    return jnp.sum(jnp.sum(x2d, axis=1, keepdims=True), axis=0, keepdims=True)


def _tpu_hw_params():
    """Return (vmem_budget_bytes, is_multi_tensorcore). Safe fallbacks."""
    vmem_phys = None
    try:
        info = pltpu.get_tpu_info()
        vmem_phys = int(getattr(info, "vmem_capacity_bytes", 0)) or None
    except Exception:
        vmem_phys = None
    try:
        kind = jax.devices()[0].device_kind.lower()
    except Exception:
        kind = ""
    is_v7 = "v7" in kind  # 2 TensorCores/chip, 64 MiB VMEM per TC
    if vmem_phys is None:
        vmem_phys = (64 << 20) if is_v7 else (128 << 20)
    # ~70% of physical VMEM: ~45 MiB on v7x, ~90 MiB on v5e/v6e — leaves
    # headroom for compiler-internal scratch while still allowing big tiles.
    budget = int(vmem_phys * 0.70)
    return budget, is_v7


def _loss_kernel(mel_t_ref, mel_p_ref, mel_pos_ref,
                 dur_t_ref, logdur_p_ref,
                 pitch_t_ref, pitch_p_ref,
                 en_t_ref, en_p_ref, src_pos_ref,
                 acc_ref,
                 *, tile_t, tiles_per_chunk, t_mel):
    p = pl.program_id(0)   # parallel chunk of T_mel tiles (1 on single-TC chips)
    t = pl.program_id(1)   # tile within the chunk (reduction axis)

    # Zero this chunk's resident (1, 1, 128) accumulator at the start of its
    # reduction.
    @pl.when(t == 0)
    def _():
        acc_ref[...] = jnp.zeros_like(acc_ref)

    lane = lax.broadcasted_iota(jnp.int32, (1, _ACC_LANES), 1)

    # ---- duration terms (tiny, per-token): computed exactly once, on the
    # first step of chunk 0 only.  (Must stay "exactly once" if the chunking
    # scheme ever changes.)
    @pl.when(jnp.logical_and(p == 0, t == 0))
    def _():
        src_mask = src_pos_ref[...] != 0
        log_dur_t = jnp.log(dur_t_ref[...].astype(jnp.float32) + 1.0)
        dd = log_dur_t - logdur_p_ref[...].astype(jnp.float32)
        dur_sq = _sum11(jnp.where(src_mask, dd * dd, 0.0))
        src_cnt = _sum11(src_mask.astype(jnp.float32))
        dur_contrib = (jnp.where(lane == 4, dur_sq, 0.0)
                       + jnp.where(lane == 5, src_cnt, 0.0))
        acc_ref[...] += dur_contrib[None, :, :]

    # ---- per-frame terms for this T_mel tile.
    # Global frame offset of this tile; rows past T_mel (Pallas-padded rows of
    # the partial last block) are masked out.
    gt = p * tiles_per_chunk + t
    row0 = gt * tile_t
    col = lax.broadcasted_iota(jnp.int32, (1, tile_t), 1)
    in_bounds = (row0 + col) < t_mel                                   # (1, TILE_T)
    frame_mask = jnp.logical_and(mel_pos_ref[...] != 0, in_bounds)     # (B, TILE_T)

    # mel L1: reduce |diff| over n_mels first, THEN mask per frame
    # (keep the where-select form: NaN/Inf-safe on padded rows).
    mel_t = mel_t_ref[...].astype(jnp.float32)
    mel_p = mel_p_ref[...].astype(jnp.float32)
    row_l1 = jnp.sum(jnp.abs(mel_t - mel_p), axis=-1)                  # (B, TILE_T)

    pd = pitch_p_ref[...].astype(jnp.float32) - pitch_t_ref[...].astype(jnp.float32)
    ed = en_p_ref[...].astype(jnp.float32) - en_t_ref[...].astype(jnp.float32)

    mel_abs_sum = _sum11(jnp.where(frame_mask, row_l1, 0.0))
    frame_cnt = _sum11(frame_mask.astype(jnp.float32))
    pitch_sq = _sum11(jnp.where(frame_mask, pd * pd, 0.0))
    en_sq = _sum11(jnp.where(frame_mask, ed * ed, 0.0))

    contrib = (jnp.where(lane == 0, mel_abs_sum, 0.0)
               + jnp.where(lane == 1, frame_cnt, 0.0)
               + jnp.where(lane == 2, pitch_sq, 0.0)
               + jnp.where(lane == 3, en_sq, 0.0))
    # Single-sublane accumulate (no 8x sublane broadcast / full-block RMW).
    acc_ref[...] += contrib[None, :, :]


def fastspeech_loss2(mel_target, mel_predicted, mel_pos, duration_target,
                     log_duration_predicted, pitch_target, pitch_predicted,
                     energy_target, energy_predicted, src_pos,
                     *, tile_t=None, num_parallel=None):
    """Masked FastSpeech2 loss.

    Returns (total, mel_l1, duration_mse, pitch_mse, energy_mse).

    Performance note: this loss is HBM-bandwidth bound and the two mel tensors
    dominate the traffic — pass them as bf16 for ~2x wall-clock; the kernel
    upcasts to f32 in-vreg so accuracy only changes by the bf16 rounding of
    the inputs.
    """
    B, T_mel, n_mels = mel_target.shape
    _, T_src = src_pos.shape

    # Counts accumulate in f32: exact only below 2^24 masked frames.
    assert B * T_mel < (1 << 24), "frame count would lose f32 exactness"

    vmem_budget, is_multi_tc = _tpu_hw_params()
    mel_itemsize = max(mel_target.dtype.itemsize, mel_predicted.dtype.itemsize)

    def vmem_needed(tt):
        # Real VMEM footprint incl. lane/sublane padding and double-buffering.
        mel = 2 * 2 * B * _rup(tt, 8) * _rup(n_mels, 128) * mel_itemsize
        frame = 5 * 2 * _rup(B, 8) * _rup(tt, 128) * 4
        tok = 3 * 2 * _rup(B, 8) * _rup(T_src, 128) * 4
        out = 2 * 8 * _ACC_LANES * 4
        return mel + frame + tok + out

    if tile_t is None:
        # Largest 128-aligned tile that fits the VMEM budget (capped at 4096
        # frames).  Big tiles amortize the ~0.35us/step pipeline overhead and
        # keep per-row DMA chunks large.
        cap = min(4096, _rup(T_mel, 128))
        best = 128
        tt = 128
        while tt <= cap:
            if vmem_needed(tt) <= vmem_budget:
                best = tt
            tt += 128
        tile_t = T_mel if T_mel <= best else best
    assert tile_t == T_mel or tile_t % 128 == 0, \
        "tile_t must equal T_mel or be a multiple of 128"

    total_tiles = pl.cdiv(T_mel, tile_t)

    # Parallel chunk axis: only useful on multi-TensorCore chips (v7x); on
    # single-TC v5e/v6e it would just be a serial loop plus wasted DMA.
    if num_parallel is None:
        num_parallel = 2 if is_multi_tc else 1
    num_chunks = max(1, min(int(num_parallel), total_tiles))
    # Only split when it divides evenly: no clamped duplicate tiles, no
    # straggler core.
    while num_chunks > 1 and total_tiles % num_chunks != 0:
        num_chunks -= 1
    tiles_per_chunk = total_tiles // num_chunks
    grid = (num_chunks, tiles_per_chunk)

    mel_spec = pl.BlockSpec((B, tile_t, n_mels),
                            lambda p, t: (0, p * tiles_per_chunk + t, 0))
    frame_spec = pl.BlockSpec((B, tile_t),
                              lambda p, t: (0, p * tiles_per_chunk + t))
    tok_spec = pl.BlockSpec((B, T_src), lambda p, t: (0, 0))

    kernel = functools.partial(_loss_kernel, tile_t=tile_t,
                               tiles_per_chunk=tiles_per_chunk, t_mel=T_mel)

    # Explicit VMEM limit derived from the real footprint (+ headroom), capped
    # by the per-generation budget (stays well under physical VMEM).
    required = vmem_needed(tile_t)
    vmem_limit = max(32 << 20, min(int(vmem_budget), required + (4 << 20)))
    if required + (2 << 20) > vmem_limit:   # explicit oversized user tile
        vmem_limit = required + (4 << 20)

    if num_chunks > 1 and is_multi_tc:
        # Actually shard the chunk axis across the two TensorCores on v7x.
        dims = (getattr(pltpu, "CORE_PARALLEL", "parallel"),
                getattr(pltpu, "ARBITRARY", "arbitrary"))
    else:
        dims = ("parallel", "arbitrary")

    inputs = (mel_target, mel_predicted, mel_pos, duration_target,
              log_duration_predicted, pitch_target, pitch_predicted,
              energy_target, energy_predicted, src_pos)
    in_bytes = sum(int(x.size) * x.dtype.itemsize for x in inputs)
    cost = pl.CostEstimate(
        flops=int(5 * B * T_mel * n_mels + 12 * B * T_mel + 6 * B * T_src),
        transcendentals=int(B * T_src),
        bytes_accessed=int(in_bytes + num_chunks * _ACC_LANES * 4),
    )

    acc = pl.pallas_call(
        kernel,
        grid=grid,
        in_specs=[mel_spec, mel_spec, frame_spec,
                  tok_spec, tok_spec,
                  frame_spec, frame_spec,
                  frame_spec, frame_spec, tok_spec],
        out_specs=pl.BlockSpec((1, 1, _ACC_LANES), lambda p, t: (p, 0, 0)),
        out_shape=jax.ShapeDtypeStruct((num_chunks, 1, _ACC_LANES), jnp.float32),
        compiler_params=pltpu.CompilerParams(
            dimension_semantics=dims,
            vmem_limit_bytes=int(vmem_limit)),
        cost_estimate=cost,
    )(*inputs)

    # Final scalar combine (a handful of ops) in plain JAX.
    sums = jnp.sum(acc[:, 0, :], axis=0)               # (128,)
    mel_abs_sum, frame_cnt = sums[0], sums[1]
    pitch_sq, en_sq = sums[2], sums[3]
    dur_sq, src_cnt = sums[4], sums[5]

    mel_loss = mel_abs_sum / (frame_cnt * float(n_mels))
    dur_loss = dur_sq / src_cnt
    pitch_loss = pitch_sq / frame_cnt
    en_loss = en_sq / frame_cnt
    total = mel_loss + dur_loss + pitch_loss + en_loss
    return total, mel_loss, dur_loss, pitch_loss, en_loss


def _reference(mel_target, mel_predicted, mel_pos, duration_target,
               log_duration_predicted, pitch_target, pitch_predicted,
               energy_target, energy_predicted, src_pos):
    """Pure-JAX reference mirroring the PyTorch masked_select semantics."""
    mel_mask = (mel_pos != 0)
    src_mask = (src_pos != 0)
    m3 = mel_mask[:, :, None]
    n_mels = mel_target.shape[-1]

    mel_cnt = jnp.sum(mel_mask).astype(jnp.float32) * n_mels
    mel_loss = jnp.sum(jnp.where(m3, jnp.abs(mel_target.astype(jnp.float32)
                                             - mel_predicted.astype(jnp.float32)),
                                 0.0)) / mel_cnt

    log_dur_t = jnp.log(duration_target.astype(jnp.float32) + 1.0)
    d = log_dur_t - log_duration_predicted
    dur_loss = jnp.sum(jnp.where(src_mask, d * d, 0.0)) / jnp.sum(src_mask)

    p = pitch_predicted - pitch_target
    pitch_loss = jnp.sum(jnp.where(mel_mask, p * p, 0.0)) / jnp.sum(mel_mask)

    e = energy_predicted - energy_target
    en_loss = jnp.sum(jnp.where(mel_mask, e * e, 0.0)) / jnp.sum(mel_mask)

    total = mel_loss + dur_loss + pitch_loss + en_loss
    return total, mel_loss, dur_loss, pitch_loss, en_loss


if __name__ == "__main__":
    B, T_MEL, N_MELS, T_SRC = 2, 200, 80, 24

    key = jax.random.PRNGKey(0)
    keys = jax.random.split(key, 8)

    mel_target = jax.random.normal(keys[0], (B, T_MEL, N_MELS), jnp.float32)
    mel_predicted = jax.random.normal(keys[1], (B, T_MEL, N_MELS), jnp.float32)
    pitch_target = jax.random.normal(keys[2], (B, T_MEL), jnp.float32)
    pitch_predicted = jax.random.normal(keys[3], (B, T_MEL), jnp.float32)
    energy_target = jax.random.normal(keys[4], (B, T_MEL), jnp.float32)
    energy_predicted = jax.random.normal(keys[5], (B, T_MEL), jnp.float32)
    duration_target = jax.random.randint(keys[6], (B, T_SRC), 0, 6, jnp.int32)
    log_duration_predicted = jax.random.normal(keys[7], (B, T_SRC), jnp.float32)

    # Positional indices with zero padding (torch-style: 1..len, then 0s).
    mel_lens = jnp.array([[T_MEL], [150]], jnp.int32)
    src_lens = jnp.array([[T_SRC], [17]], jnp.int32)
    t_mel = jnp.arange(T_MEL, dtype=jnp.int32)[None, :]
    t_src = jnp.arange(T_SRC, dtype=jnp.int32)[None, :]
    mel_pos = jnp.where(t_mel < mel_lens, t_mel + 1, 0).astype(jnp.int32)
    src_pos = jnp.where(t_src < src_lens, t_src + 1, 0).astype(jnp.int32)

    args = (mel_target, mel_predicted, mel_pos, duration_target,
            log_duration_predicted, pitch_target, pitch_predicted,
            energy_target, energy_predicted, src_pos)

    ref = _reference(*args)

    # 1) auto-sized tile (here: a single full-extent T_mel tile).
    out_auto = jax.block_until_ready(fastspeech_loss2(*args))
    # 2) explicitly tiled: exercises the T_mel grid and the tail tile (200 % 128 != 0).
    out_tiled = jax.block_until_ready(fastspeech_loss2(*args, tile_t=128))
    # 3) explicit 2-chunk split (balanced: 2 tiles / 2 chunks): exercises the
    #    parallel chunk axis and the cross-chunk accumulator reduction.
    out_par = jax.block_until_ready(
        fastspeech_loss2(*args, tile_t=128, num_parallel=2))

    for out in (out_auto, out_tiled, out_par):
        for got, want in zip(out, ref):
            assert jnp.allclose(got, want, rtol=1e-4, atol=1e-5), (got, want)

    # 4) bf16 mel inputs (recommended for production: halves HBM traffic).
    mel_t_bf = mel_target.astype(jnp.bfloat16)
    mel_p_bf = mel_predicted.astype(jnp.bfloat16)
    args_bf = (mel_t_bf, mel_p_bf) + args[2:]
    ref_bf = _reference(mel_t_bf.astype(jnp.float32),
                        mel_p_bf.astype(jnp.float32), *args[2:])
    out_bf = jax.block_until_ready(fastspeech_loss2(*args_bf))
    for got, want in zip(out_bf, ref_bf):
        assert jnp.allclose(got, want, rtol=1e-3, atol=1e-4), (got, want)

    print("KERNEL_OK")
</pallas_src>

<mosaic_0001>
module attributes {stable_mosaic.version = 11 : i64} {
  func.func @_loss_kernel(%arg0: i32, %arg1: i32, %arg2: memref<2x200x80xf32, #tpu.memory_space<vmem>>, %arg3: memref<2x200x80xf32, #tpu.memory_space<vmem>>, %arg4: memref<2x200xi32, #tpu.memory_space<vmem>>, %arg5: memref<2x24xi32, #tpu.memory_space<vmem>>, %arg6: memref<2x24xf32, #tpu.memory_space<vmem>>, %arg7: memref<2x200xf32, #tpu.memory_space<vmem>>, %arg8: memref<2x200xf32, #tpu.memory_space<vmem>>, %arg9: memref<2x200xf32, #tpu.memory_space<vmem>>, %arg10: memref<2x200xf32, #tpu.memory_space<vmem>>, %arg11: memref<2x24xi32, #tpu.memory_space<vmem>>, %arg12: memref<1x1x128xf32, #tpu.memory_space<vmem>>) attributes {dimension_semantics = [#tpu.dimension_semantics<parallel>, #tpu.dimension_semantics<arbitrary>], iteration_bounds = array<i64: 1, 1>, scalar_prefetch = 0 : i64, scratch_operands = 0 : i64, tpu.core_type = #tpu.core_type<tc>, window_params = [{transform_indices = @transform_0, window_bounds = array<i64: 2, 200, 80>}, {transform_indices = @transform_1, window_bounds = array<i64: 2, 200, 80>}, {transform_indices = @transform_2, window_bounds = array<i64: 2, 200>}, {pipeline_mode = #tpu.pipeline_mode<synchronous>, transform_indices = @transform_3, window_bounds = array<i64: 2, 24>}, {pipeline_mode = #tpu.pipeline_mode<synchronous>, transform_indices = @transform_4, window_bounds = array<i64: 2, 24>}, {transform_indices = @transform_5, window_bounds = array<i64: 2, 200>}, {transform_indices = @transform_6, window_bounds = array<i64: 2, 200>}, {transform_indices = @transform_7, window_bounds = array<i64: 2, 200>}, {transform_indices = @transform_8, window_bounds = array<i64: 2, 200>}, {pipeline_mode = #tpu.pipeline_mode<synchronous>, transform_indices = @transform_9, window_bounds = array<i64: 2, 24>}, {transform_indices = @transform_10, window_bounds = array<i64: 1, 1, 128>}]} {
    %c0_i32 = arith.constant 0 : i32
    %0 = arith.cmpi eq, %arg1, %c0_i32 : i32
    %1 = arith.extui %0 : i1 to i32
    %c0_i32_0 = arith.constant 0 : i32
    %2 = arith.cmpi ne, %1, %c0_i32_0 : i32
    scf.if %2 {
      %cst_44 = arith.constant 0.000000e+00 : f32
      %90 = vector.broadcast %cst_44 : f32 to vector<1x1x128xf32>
      %c0_45 = arith.constant 0 : index
      %c0_46 = arith.constant 0 : index
      %c0_47 = arith.constant 0 : index
      %91 = vector.load %arg12[%c0_45, %c0_46, %c0_47] : memref<1x1x128xf32, #tpu.memory_space<vmem>>, vector<1x1x128xf32>
      tpu.vector_store %arg12[%c0_45, %c0_46, %c0_47], %90 {strides = array<i32>} : memref<1x1x128xf32, #tpu.memory_space<vmem>>, vector<1x1x128xf32>,
    } else {
    }
    %3 = tpu.iota {dimensions = array<i32: 1>} : vector<1x128xi32>
    %c0_i32_1 = arith.constant 0 : i32
    %4 = arith.cmpi eq, %arg0, %c0_i32_1 : i32
    %c0_i32_2 = arith.constant 0 : i32
    %5 = arith.cmpi eq, %arg1, %c0_i32_2 : i32
    %6 = arith.andi %4, %5 : i1
    %7 = arith.extui %6 : i1 to i32
    %c0_i32_3 = arith.constant 0 : i32
    %8 = arith.cmpi ne, %7, %c0_i32_3 : i32
    scf.if %8 {
      %c0_44 = arith.constant 0 : index
      %c0_45 = arith.constant 0 : index
      %90 = vector.load %arg11[%c0_44, %c0_45] : memref<2x24xi32, #tpu.memory_space<vmem>>, vector<2x24xi32>
      %c0_i32_46 = arith.constant 0 : i32
      %91 = vector.broadcast %c0_i32_46 : i32 to vector<2x24xi32>
      %92 = arith.cmpi ne, %90, %91 : vector<2x24xi32>
      %c0_47 = arith.constant 0 : index
      %c0_48 = arith.constant 0 : index
      %93 = vector.load %arg5[%c0_47, %c0_48] : memref<2x24xi32, #tpu.memory_space<vmem>>, vector<2x24xi32>
      %94 = arith.sitofp %93 : vector<2x24xi32> to vector<2x24xf32>
      %cst_49 = arith.constant 1.000000e+00 : f32
      %95 = vector.broadcast %cst_49 : f32 to vector<2x24xf32>
      %96 = arith.addf %94, %95 : vector<2x24xf32>
      %97 = math.log %96 : vector<2x24xf32>
      %c0_50 = arith.constant 0 : index
      %c0_51 = arith.constant 0 : index
      %98 = vector.load %arg6[%c0_50, %c0_51] : memref<2x24xf32, #tpu.memory_space<vmem>>, vector<2x24xf32>
      %99 = arith.subf %97, %98 : vector<2x24xf32>
      %100 = arith.mulf %99, %99 : vector<2x24xf32>
      %cst_52 = arith.constant 0.000000e+00 : f32
      %101 = vector.broadcast %cst_52 : f32 to vector<2x24xf32>
      %102 = arith.select %92, %100, %101 : vector<2x24xi1>, vector<2x24xf32>
      %cst_53 = arith.constant dense<0.000000e+00> : vector<2xf32>
      %103 = vector.multi_reduction <add>, %102, %cst_53 [1] : vector<2x24xf32> to vector<2xf32>
      %104 = vector.shape_cast %103 : vector<2xf32> to vector<2x1xf32>
      %cst_54 = arith.constant dense<0.000000e+00> : vector<1xf32>
      %105 = vector.multi_reduction <add>, %104, %cst_54 [0] : vector<2x1xf32> to vector<1xf32>
      %106 = vector.shape_cast %105 : vector<1xf32> to vector<1x1xf32>
      %107 = arith.extui %92 : vector<2x24xi1> to vector<2x24xi32>
      %108 = arith.sitofp %107 : vector<2x24xi32> to vector<2x24xf32>
      %cst_55 = arith.constant dense<0.000000e+00> : vector<2xf32>
      %109 = vector.multi_reduction <add>, %108, %cst_55 [1] : vector<2x24xf32> to vector<2xf32>
      %110 = vector.shape_cast %109 : vector<2xf32> to vector<2x1xf32>
      %cst_56 = arith.constant dense<0.000000e+00> : vector<1xf32>
      %111 = vector.multi_reduction <add>, %110, %cst_56 [0] : vector<2x1xf32> to vector<1xf32>
      %112 = vector.shape_cast %111 : vector<1xf32> to vector<1x1xf32>
      %c4_i32 = arith.constant 4 : i32
      %113 = vector.broadcast %c4_i32 : i32 to vector<1x128xi32>
      %114 = arith.cmpi eq, %3, %113 : vector<1x128xi32>
      %cst_57 = arith.constant 0.000000e+00 : f32
      %115 = vector.shape_cast %106 : vector<1x1xf32> to vector<1x1xf32>
      %116 = vector.broadcast %115 : vector<1x1xf32> to vector<1x128xf32>
      %117 = vector.broadcast %cst_57 : f32 to vector<1x128xf32>
      %118 = arith.select %114, %116, %117 : vector<1x128xi1>, vector<1x128xf32>
      %c5_i32 = arith.constant 5 : i32
      %119 = vector.broadcast %c5_i32 : i32 to vector<1x128xi32>
      %120 = arith.cmpi eq, %3, %119 : vector<1x128xi32>
      %cst_58 = arith.constant 0.000000e+00 : f32
      %121 = vector.shape_cast %112 : vector<1x1xf32> to vector<1x1xf32>
      %122 = vector.broadcast %121 : vector<1x1xf32> to vector<1x128xf32>
      %123 = vector.broadcast %cst_58 : f32 to vector<1x128xf32>
      %124 = arith.select %120, %122, %123 : vector<1x128xi1>, vector<1x128xf32>
      %125 = arith.addf %118, %124 : vector<1x128xf32>
      %c0_59 = arith.constant 0 : index
      %c0_60 = arith.constant 0 : index
      %c0_61 = arith.constant 0 : index
      %126 = vector.load %arg12[%c0_59, %c0_60, %c0_61] : memref<1x1x128xf32, #tpu.memory_space<vmem>>, vector<1x1x128xf32>
      %127 = vector.shape_cast %125 : vector<1x128xf32> to vector<1x1x128xf32>
      %128 = arith.addf %126, %127 : vector<1x1x128xf32>
      %c0_62 = arith.constant 0 : index
      %c0_63 = arith.constant 0 : index
      %c0_64 = arith.constant 0 : index
      %129 = vector.load %arg12[%c0_62, %c0_63, %c0_64] : memref<1x1x128xf32, #tpu.memory_space<vmem>>, vector<1x1x128xf32>
      tpu.vector_store %arg12[%c0_62, %c0_63, %c0_64], %128 {strides = array<i32>} : memref<1x1x128xf32, #tpu.memory_space<vmem>>, vector<1x1x128xf32>,
    } else {
    }
    %c1_i32 = arith.constant 1 : i32
    %9 = arith.muli %arg0, %c1_i32 : i32
    %10 = arith.addi %9, %arg1 : i32
    %c200_i32 = arith.constant 200 : i32
    %11 = arith.muli %10, %c200_i32 : i32
    %12 = tpu.iota {dimensions = array<i32: 1>} : vector<1x200xi32>
    %13 = vector.broadcast %11 : i32 to vector<1x200xi32>
    %14 = arith.addi %13, %12 : vector<1x200xi32>
    %c200_i32_4 = arith.constant 200 : i32
    %15 = vector.broadcast %c200_i32_4 : i32 to vector<1x200xi32>
    %16 = arith.cmpi slt, %14, %15 : vector<1x200xi32>
    %c0 = arith.constant 0 : index
    %c0_5 = arith.constant 0 : index
    %17 = vector.load %arg4[%c0, %c0_5] : memref<2x200xi32, #tpu.memory_space<vmem>>, vector<2x200xi32>
    %c0_i32_6 = arith.constant 0 : i32
    %18 = vector.broadcast %c0_i32_6 : i32 to vector<2x200xi32>
    %19 = arith.cmpi ne, %17, %18 : vector<2x200xi32>
    %20 = vector.broadcast %16 : vector<1x200xi1> to vector<2x200xi1>
    %21 = arith.andi %19, %20 : vector<2x200xi1>
    %c0_7 = arith.constant 0 : index
    %c0_8 = arith.constant 0 : index
    %c0_9 = arith.constant 0 : index
    %22 = vector.load %arg2[%c0_7, %c0_8, %c0_9] : memref<2x200x80xf32, #tpu.memory_space<vmem>>, vector<2x200x80xf32>
    %c0_10 = arith.constant 0 : index
    %c0_11 = arith.constant 0 : index
    %c0_12 = arith.constant 0 : index
    %23 = vector.load %arg3[%c0_10, %c0_11, %c0_12] : memref<2x200x80xf32, #tpu.memory_space<vmem>>, vector<2x200x80xf32>
    %24 = arith.subf %22, %23 : vector<2x200x80xf32>
    %25 = math.absf %24 : vector<2x200x80xf32>
    %cst = arith.constant dense<0.000000e+00> : vector<2x200xf32>
    %26 = vector.multi_reduction <add>, %25, %cst [2] : vector<2x200x80xf32> to vector<2x200xf32>
    %c0_13 = arith.constant 0 : index
    %c0_14 = arith.constant 0 : index
    %27 = vector.load %arg8[%c0_13, %c0_14] : memref<2x200xf32, #tpu.memory_space<vmem>>, vector<2x200xf32>
    %c0_15 = arith.constant 0 : index
    %c0_16 = arith.constant 0 : index
    %28 = vector.load %arg7[%c0_15, %c0_16] : memref<2x200xf32, #tpu.memory_space<vmem>>, vector<2x200xf32>
    %29 = arith.subf %27, %28 : vector<2x200xf32>
    %c0_17 = arith.constant 0 : index
    %c0_18 = arith.constant 0 : index
    %30 = vector.load %arg10[%c0_17, %c0_18] : memref<2x200xf32, #tpu.memory_space<vmem>>, vector<2x200xf32>
    %c0_19 = arith.constant 0 : index
    %c0_20 = arith.constant 0 : index
    %31 = vector.load %arg9[%c0_19, %c0_20] : memref<2x200xf32, #tpu.memory_space<vmem>>, vector<2x200xf32>
    %32 = arith.subf %30, %31 : vector<2x200xf32>
    %cst_21 = arith.constant 0.000000e+00 : f32
    %33 = vector.broadcast %cst_21 : f32 to vector<2x200xf32>
    %34 = arith.select %21, %26, %33 : vector<2x200xi1>, vector<2x200xf32>
    %cst_22 = arith.constant dense<0.000000e+00> : vector<2xf32>
    %35 = vector.multi_reduction <add>, %34, %cst_22 [1] : vector<2x200xf32> to vector<2xf32>
    %36 = vector.shape_cast %35 : vector<2xf32> to vector<2x1xf32>
    %cst_23 = arith.constant dense<0.000000e+00> : vector<1xf32>
    %37 = vector.multi_reduction <add>, %36, %cst_23 [0] : vector<2x1xf32> to vector<1xf32>
    %38 = vector.shape_cast %37 : vector<1xf32> to vector<1x1xf32>
    %39 = arith.extui %21 : vector<2x200xi1> to vector<2x200xi32>
    %40 = arith.sitofp %39 : vector<2x200xi32> to vector<2x200xf32>
    %cst_24 = arith.constant dense<0.000000e+00> : vector<2xf32>
    %41 = vector.multi_reduction <add>, %40, %cst_24 [1] : vector<2x200xf32> to vector<2xf32>
    %42 = vector.shape_cast %41 : vector<2xf32> to vector<2x1xf32>
    %cst_25 = arith.constant dense<0.000000e+00> : vector<1xf32>
    %43 = vector.multi_reduction <add>, %42, %cst_25 [0] : vector<2x1xf32> to vector<1xf32>
    %44 = vector.shape_cast %43 : vector<1xf32> to vector<1x1xf32>
    %45 = arith.mulf %29, %29 : vector<2x200xf32>
    %cst_26 = arith.constant 0.000000e+00 : f32
    %46 = vector.broadcast %cst_26 : f32 to vector<2x200xf32>
    %47 = arith.select %21, %45, %46 : vector<2x200xi1>, vector<2x200xf32>
    %cst_27 = arith.constant dense<0.000000e+00> : vector<2xf32>
    %48 = vector.multi_reduction <add>, %47, %cst_27 [1] : vector<2x200xf32> to vector<2xf32>
    %49 = vector.shape_cast %48 : vector<2xf32> to vector<2x1xf32>
    %cst_28 = arith.constant dense<0.000000e+00> : vector<1xf32>
    %50 = vector.multi_reduction <add>, %49, %cst_28 [0] : vector<2x1xf32> to vector<1xf32>
    %51 = vector.shape_cast %50 : vector<1xf32> to vector<1x1xf32>
    %52 = arith.mulf %32, %32 : vector<2x200xf32>
    %cst_29 = arith.constant 0.000000e+00 : f32
    %53 = vector.broadcast %cst_29 : f32 to vector<2x200xf32>
    %54 = arith.select %21, %52, %53 : vector<2x200xi1>, vector<2x200xf32>
    %cst_30 = arith.constant dense<0.000000e+00> : vector<2xf32>
    %55 = vector.multi_reduction <add>, %54, %cst_30 [1] : vector<2x200xf32> to vector<2xf32>
    %56 = vector.shape_cast %55 : vector<2xf32> to vector<2x1xf32>
    %cst_31 = arith.constant dense<0.000000e+00> : vector<1xf32>
    %57 = vector.multi_reduction <add>, %56, %cst_31 [0] : vector<2x1xf32> to vector<1xf32>
    %58 = vector.shape_cast %57 : vector<1xf32> to vector<1x1xf32>
    %c0_i32_32 = arith.constant 0 : i32
    %59 = vector.broadcast %c0_i32_32 : i32 to vector<1x128xi32>
    %60 = arith.cmpi eq, %3, %59 : vector<1x128xi32>
    %cst_33 = arith.constant 0.000000e+00 : f32
    %61 = vector.shape_cast %38 : vector<1x1xf32> to vector<1x1xf32>
    %62 = vector.broadcast %61 : vector<1x1xf32> to vector<1x128xf32>
    %63 = vector.broadcast %cst_33 : f32 to vector<1x128xf32>
    %64 = arith.select %60, %62, %63 : vector<1x128xi1>, vector<1x128xf32>
    %c1_i32_34 = arith.constant 1 : i32
    %65 = vector.broadcast %c1_i32_34 : i32 to vector<1x128xi32>
    %66 = arith.cmpi eq, %3, %65 : vector<1x128xi32>
    %cst_35 = arith.constant 0.000000e+00 : f32
    %67 = vector.shape_cast %44 : vector<1x1xf32> to vector<1x1xf32>
    %68 = vector.broadcast %67 : vector<1x1xf32> to vector<1x128xf32>
    %69 = vector.broadcast %cst_35 : f32 to vector<1x128xf32>
    %70 = arith.select %66, %68, %69 : vector<1x128xi1>, vector<1x128xf32>
    %71 = arith.addf %64, %70 : vector<1x128xf32>
    %c2_i32 = arith.constant 2 : i32
    %72 = vector.broadcast %c2_i32 : i32 to vector<1x128xi32>
    %73 = arith.cmpi eq, %3, %72 : vector<1x128xi32>
    %cst_36 = arith.constant 0.000000e+00 : f32
    %74 = vector.shape_cast %51 : vector<1x1xf32> to vector<1x1xf32>
    %75 = vector.broadcast %74 : vector<1x1xf32> to vector<1x128xf32>
    %76 = vector.broadcast %cst_36 : f32 to vector<1x128xf32>
    %77 = arith.select %73, %75, %76 : vector<1x128xi1>, vector<1x128xf32>
    %78 = arith.addf %71, %77 : vector<1x128xf32>
    %c3_i32 = arith.constant 3 : i32
    %79 = vector.broadcast %c3_i32 : i32 to vector<1x128xi32>
    %80 = arith.cmpi eq, %3, %79 : vector<1x128xi32>
    %cst_37 = arith.constant 0.000000e+00 : f32
    %81 = vector.shape_cast %58 : vector<1x1xf32> to vector<1x1xf32>
    %82 = vector.broadcast %81 : vector<1x1xf32> to vector<1x128xf32>
    %83 = vector.broadcast %cst_37 : f32 to vector<1x128xf32>
    %84 = arith.select %80, %82, %83 : vector<1x128xi1>, vector<1x128xf32>
    %85 = arith.addf %78, %84 : vector<1x128xf32>
    %c0_38 = arith.constant 0 : index
    %c0_39 = arith.constant 0 : index
    %c0_40 = arith.constant 0 : index
    %86 = vector.load %arg12[%c0_38, %c0_39, %c0_40] : memref<1x1x128xf32, #tpu.memory_space<vmem>>, vector<1x1x128xf32>
    %87 = vector.shape_cast %85 : vector<1x128xf32> to vector<1x1x128xf32>
    %88 = arith.addf %86, %87 : vector<1x1x128xf32>
    %c0_41 = arith.constant 0 : index
    %c0_42 = arith.constant 0 : index
    %c0_43 = arith.constant 0 : index
    %89 = vector.load %arg12[%c0_41, %c0_42, %c0_43] : memref<1x1x128xf32, #tpu.memory_space<vmem>>, vector<1x1x128xf32>
    tpu.vector_store %arg12[%c0_41, %c0_42, %c0_43], %88 {strides = array<i32>} : memref<1x1x128xf32, #tpu.memory_space<vmem>>, vector<1x1x128xf32>,
    return
  }
  func.func @transform_0(%arg0: i32, %arg1: i32) -> (i32, i32, i32) {
    %c1_i32 = arith.constant 1 : i32
    %0 = arith.muli %arg0, %c1_i32 : i32
    %1 = arith.addi %0, %arg1 : i32
    %c0_i32 = arith.constant 0 : i32
    %c0_i32_0 = arith.constant 0 : i32
    %c0_i32_1 = arith.constant 0 : i32
    return %c0_i32, %1, %c0_i32_0 : i32, i32, i32
  }
  func.func @transform_1(%arg0: i32, %arg1: i32) -> (i32, i32, i32) {
    %c1_i32 = arith.constant 1 : i32
    %0 = arith.muli %arg0, %c1_i32 : i32
    %1 = arith.addi %0, %arg1 : i32
    %c0_i32 = arith.constant 0 : i32
    %c0_i32_0 = arith.constant 0 : i32
    %c0_i32_1 = arith.constant 0 : i32
    return %c0_i32, %1, %c0_i32_0 : i32, i32, i32
  }
  func.func @transform_2(%arg0: i32, %arg1: i32) -> (i32, i32) {
    %c1_i32 = arith.constant 1 : i32
    %0 = arith.muli %arg0, %c1_i32 : i32
    %1 = arith.addi %0, %arg1 : i32
    %c0_i32 = arith.constant 0 : i32
    %c0_i32_0 = arith.constant 0 : i32
    return %c0_i32, %1 : i32, i32
  }
  func.func @transform_3(%arg0: i32, %arg1: i32) -> (i32, i32) {
    %c0_i32 = arith.constant 0 : i32
    %c0_i32_0 = arith.constant 0 : i32
    %c0_i32_1 = arith.constant 0 : i32
    return %c0_i32, %c0_i32_0 : i32, i32
  }
  func.func @transform_4(%arg0: i32, %arg1: i32) -> (i32, i32) {
    %c0_i32 = arith.constant 0 : i32
    %c0_i32_0 = arith.constant 0 : i32
    %c0_i32_1 = arith.constant 0 : i32
    return %c0_i32, %c0_i32_0 : i32, i32
  }
  func.func @transform_5(%arg0: i32, %arg1: i32) -> (i32, i32) {
    %c1_i32 = arith.constant 1 : i32
    %0 = arith.muli %arg0, %c1_i32 : i32
    %1 = arith.addi %0, %arg1 : i32
    %c0_i32 = arith.constant 0 : i32
    %c0_i32_0 = arith.constant 0 : i32
    return %c0_i32, %1 : i32, i32
  }
  func.func @transform_6(%arg0: i32, %arg1: i32) -> (i32, i32) {
    %c1_i32 = arith.constant 1 : i32
    %0 = arith.muli %arg0, %c1_i32 : i32
    %1 = arith.addi %0, %arg1 : i32
    %c0_i32 = arith.constant 0 : i32
    %c0_i32_0 = arith.constant 0 : i32
    return %c0_i32, %1 : i32, i32
  }
  func.func @transform_7(%arg0: i32, %arg1: i32) -> (i32, i32) {
    %c1_i32 = arith.constant 1 : i32
    %0 = arith.muli %arg0, %c1_i32 : i32
    %1 = arith.addi %0, %arg1 : i32
    %c0_i32 = arith.constant 0 : i32
    %c0_i32_0 = arith.constant 0 : i32
    return %c0_i32, %1 : i32, i32
  }
  func.func @transform_8(%arg0: i32, %arg1: i32) -> (i32, i32) {
    %c1_i32 = arith.constant 1 : i32
    %0 = arith.muli %arg0, %c1_i32 : i32
    %1 = arith.addi %0, %arg1 : i32
    %c0_i32 = arith.constant 0 : i32
    %c0_i32_0 = arith.constant 0 : i32
    return %c0_i32, %1 : i32, i32
  }
  func.func @transform_9(%arg0: i32, %arg1: i32) -> (i32, i32) {
    %c0_i32 = arith.constant 0 : i32
    %c0_i32_0 = arith.constant 0 : i32
    %c0_i32_1 = arith.constant 0 : i32
    return %c0_i32, %c0_i32_0 : i32, i32
  }
  func.func @transform_10(%arg0: i32, %arg1: i32) -> (i32, i32, i32) {
    %c0_i32 = arith.constant 0 : i32
    %c0_i32_0 = arith.constant 0 : i32
    %c0_i32_1 = arith.constant 0 : i32
    return %arg0, %c0_i32, %c0_i32_0 : i32, i32, i32
  }
}

</mosaic_0001>

<llo_original>
// kernel: tpu_custom_call.1
$region0: #{tpu_custom_call.1}
  #allocation0 [shape = 'u32[]', space=smem, size = 0x4, offset = 0x4, fixed_abs, tag = 'smem constant byte address 0x4 - core index']
  #allocation1 [shape = 'u32[72,128]{1,0:T(1,128)}', space=vmem, size = 0x9000, scoped, tag = 'internal scratch']
  %s0 = inlined_call_operand.vmem [shape: f32[2,200,80], index: 0, kind: input, shape index: {}]
  %s1 = inlined_call_operand.vmem [shape: f32[2,200,80], index: 1, kind: input, shape index: {}]
  %s2 = inlined_call_operand.vmem [shape: s32[2,200], index: 2, kind: input, shape index: {}]
  %s3 = inlined_call_operand.vmem [shape: s32[2,24], index: 3, kind: input, shape index: {}]
  %s4 = inlined_call_operand.vmem [shape: f32[2,24], index: 4, kind: input, shape index: {}]
  %s5 = inlined_call_operand.vmem [shape: f32[2,200], index: 5, kind: input, shape index: {}]
  %s6 = inlined_call_operand.vmem [shape: f32[2,200], index: 6, kind: input, shape index: {}]
  %s7 = inlined_call_operand.vmem [shape: f32[2,200], index: 7, kind: input, shape index: {}]
  %s8 = inlined_call_operand.vmem [shape: f32[2,200], index: 8, kind: input, shape index: {}]
  %s9 = inlined_call_operand.vmem [shape: s32[2,24], index: 9, kind: input, shape index: {}]
  %s10 = inlined_call_operand.hbm [shape: f32[1,1,128], index: 10, kind: output, shape index: {}]
  %s11 = sld [smem:[#allocation0]]
  $region58: #{tpu_custom_call.1} parent=0
    _
  %s13 = ssub.s32 1, %s11
  %s14 = scalar_select 0, %s13, %s11
  $region1: #{tpu_custom_call.1} parent=0
    #allocation2 [shape = 'u8[512]{0}', space=vmem, size = 0x400, scoped, tag = 'output window, operand 0, single buffered']
    #allocation3 [shape = 's32[1]{0}', space=sflag, size = 0x4, scoped, tag = 'scoped memory for tpu_custom_call.1']
    %15 = vsyncpa [#allocation3], 0
    // Predicated region
    $region2: #{tpu_custom_call.1} parent=1 // pred_check
      _
    $region3: #{tpu_custom_call.1} parent=1 // pred_check_branch
      %17 = sbr.rel (0) target = $region5
    $region4: #{tpu_custom_call.1} parent=1 // pred_region
      %s18 = sadd.s32 0, 0
      %s19 = smul.u32 25, %s18
      %p20 = scmp.lt.s32.totalorder %s19, 24
      %s21 = scalar_select %p20, %s19, 24
      %s22 = smul.addr %s21, 8
      %s23 = scalar_lea.vmem %s0, %s22
      %s24 = sadd.s32 0, 0
      %s25 = smul.u32 25, %s24
    $region5: #{tpu_custom_call.1} parent=1 // pred_fallthru
      _
    // Predicated region
    $region6: #{tpu_custom_call.1} parent=1 // pred_check
      _
    $region7: #{tpu_custom_call.1} parent=1 // pred_check_branch
      %27 = sbr.rel (0) target = $region9
    $region8: #{tpu_custom_call.1} parent=1 // pred_region
      %s28 = sadd.s32 0, 0
      %s29 = smul.u32 25, %s28
      %p30 = scmp.lt.s32.totalorder %s29, 24
      %s31 = scalar_select %p30, %s29, 24
      %s32 = smul.addr %s31, 8
      %s33 = scalar_lea.vmem %s1, %s32
      %s34 = sadd.s32 0, 0
      %s35 = smul.u32 25, %s34
    $region9: #{tpu_custom_call.1} parent=1 // pred_fallthru
      _
    // Predicated region
    $region10: #{tpu_custom_call.1} parent=1 // pred_check
      _
    $region11: #{tpu_custom_call.1} parent=1 // pred_check_branch
      %37 = sbr.rel (0) target = $region13
    $region12: #{tpu_custom_call.1} parent=1 // pred_region
      %s38 = sadd.s32 0, 0
      %s39 = smul.u32 2, %s38
      %p40 = scmp.lt.s32.totalorder %s39, 1
      %s41 = scalar_select %p40, %s39, 1
      %s42 = smul.addr %s41, 2
      %s43 = scalar_lea.vmem %s2, %s42
      %s44 = sadd.s32 0, 0
      %s45 = smul.u32 2, %s44
    $region13: #{tpu_custom_call.1} parent=1 // pred_fallthru
      _
    // Predicated region
    $region14: #{tpu_custom_call.1} parent=1 // pred_check
      _
    $region15: #{tpu_custom_call.1} parent=1 // pred_check_branch
      %47 = sbr.rel (0) target = $region17
    $region16: #{tpu_custom_call.1} parent=1 // pred_region
      _
    $region17: #{tpu_custom_call.1} parent=1 // pred_fallthru
      _
    // Predicated region
    $region18: #{tpu_custom_call.1} parent=1 // pred_check
      _
    $region19: #{tpu_custom_call.1} parent=1 // pred_check_branch
      %49 = sbr.rel (0) target = $region21
    $region20: #{tpu_custom_call.1} parent=1 // pred_region
      _
    $region21: #{tpu_custom_call.1} parent=1 // pred_fallthru
      _
    // Predicated region
    $region22: #{tpu_custom_call.1} parent=1 // pred_check
      _
    $region23: #{tpu_custom_call.1} parent=1 // pred_check_branch
      %51 = sbr.rel (0) target = $region25
    $region24: #{tpu_custom_call.1} parent=1 // pred_region
      %s52 = sadd.s32 0, 0
      %s53 = smul.u32 2, %s52
      %p54 = scmp.lt.s32.totalorder %s53, 1
      %s55 = scalar_select %p54, %s53, 1
      %s56 = smul.addr %s55, 2
      %s57 = scalar_lea.vmem %s5, %s56
      %s58 = sadd.s32 0, 0
      %s59 = smul.u32 2, %s58
    $region25: #{tpu_custom_call.1} parent=1 // pred_fallthru
      _
    // Predicated region
    $region26: #{tpu_custom_call.1} parent=1 // pred_check
      _
    $region27: #{tpu_custom_call.1} parent=1 // pred_check_branch
      %61 = sbr.rel (0) target = $region29
    $region28: #{tpu_custom_call.1} parent=1 // pred_region
      %s62 = sadd.s32 0, 0
      %s63 = smul.u32 2, %s62
      %p64 = scmp.lt.s32.totalorder %s63, 1
      %s65 = scalar_select %p64, %s63, 1
      %s66 = smul.addr %s65, 2
      %s67 = scalar_lea.vmem %s6, %s66
      %s68 = sadd.s32 0, 0
      %s69 = smul.u32 2, %s68
    $region29: #{tpu_custom_call.1} parent=1 // pred_fallthru
      _
    // Predicated region
    $region30: #{tpu_custom_call.1} parent=1 // pred_check
      _
    $region31: #{tpu_custom_call.1} parent=1 // pred_check_branch
      %71 = sbr.rel (0) target = $region33
    $region32: #{tpu_custom_call.1} parent=1 // pred_region
      %s72 = sadd.s32 0, 0
      %s73 = smul.u32 2, %s72
      %p74 = scmp.lt.s32.totalorder %s73, 1
      %s75 = scalar_select %p74, %s73, 1
      %s76 = smul.addr %s75, 2
      %s77 = scalar_lea.vmem %s7, %s76
      %s78 = sadd.s32 0, 0
      %s79 = smul.u32 2, %s78
    $region33: #{tpu_custom_call.1} parent=1 // pred_fallthru
      _
    // Predicated region
    $region34: #{tpu_custom_call.1} parent=1 // pred_check
      _
    $region35: #{tpu_custom_call.1} parent=1 // pred_check_branch
      %81 = sbr.rel (0) target = $region37
    $region36: #{tpu_custom_call.1} parent=1 // pred_region
      %s82 = sadd.s32 0, 0
      %s83 = smul.u32 2, %s82
      %p84 = scmp.lt.s32.totalorder %s83, 1
      %s85 = scalar_select %p84, %s83, 1
      %s86 = smul.addr %s85, 2
      %s87 = scalar_lea.vmem %s8, %s86
      %s88 = sadd.s32 0, 0
      %s89 = smul.u32 2, %s88
    $region37: #{tpu_custom_call.1} parent=1 // pred_fallthru
      _
    // Predicated region
    $region38: #{tpu_custom_call.1} parent=1 // pred_check
      _
    $region39: #{tpu_custom_call.1} parent=1 // pred_check_branch
      %91 = sbr.rel (0) target = $region41
    $region40: #{tpu_custom_call.1} parent=1 // pred_region
      _
    $region41: #{tpu_custom_call.1} parent=1 // pred_fallthru
      _
    %s92 = sadd.s32 0, 0
    %s93 = smul.u32 25, %s92
    %p94 = scmp.lt.s32.totalorder %s93, 24
    %s95 = scalar_select %p94, %s93, 24
    %s96 = smul.addr %s95, 8
    %s97 = scalar_lea.vmem %s0, %s96
    %s98 = sadd.s32 0, 0
    %s99 = smul.u32 25, %s98
    %p100 = scmp.lt.s32.totalorder %s99, 24
    %s101 = scalar_select %p100, %s99, 24
    %s102 = smul.addr %s101, 8
    %s103 = scalar_lea.vmem %s1, %s102
    %s104 = sadd.s32 0, 0
    %s105 = smul.u32 2, %s104
    %p106 = scmp.lt.s32.totalorder %s105, 1
    %s107 = scalar_select %p106, %s105, 1
    %s108 = smul.addr %s107, 2
    %s109 = scalar_lea.vmem %s2, %s108
    %s110 = sadd.s32 0, 0
    %s111 = smul.u32 2, %s110
    %p112 = scmp.lt.s32.totalorder %s111, 1
    %s113 = scalar_select %p112, %s111, 1
    %s114 = smul.addr %s113, 2
    %s115 = scalar_lea.vmem %s5, %s114
    %s116 = sadd.s32 0, 0
    %s117 = smul.u32 2, %s116
    %p118 = scmp.lt.s32.totalorder %s117, 1
    %s119 = scalar_select %p118, %s117, 1
    %s120 = smul.addr %s119, 2
    %s121 = scalar_lea.vmem %s6, %s120
    %s122 = sadd.s32 0, 0
    %s123 = smul.u32 2, %s122
    %p124 = scmp.lt.s32.totalorder %s123, 1
    %s125 = scalar_select %p124, %s123, 1
    %s126 = smul.addr %s125, 2
    %s127 = scalar_lea.vmem %s7, %s126
    %s128 = sadd.s32 0, 0
    %s129 = smul.u32 2, %s128
    %p130 = scmp.lt.s32.totalorder %s129, 1
    %s131 = scalar_select %p130, %s129, 1
    %s132 = smul.addr %s131, 2
    %s133 = scalar_lea.vmem %s8, %s132
    %s134 = sadd.s32 0, 0
    %s135 = smul.u32 25, %s134
    %p136 = scmp.lt.s32.totalorder %s135, 24
    %s137 = scalar_select %p136, %s135, 24
    %s138 = smul.addr %s137, 8
    %s139 = scalar_lea.vmem %s0, %s138
    %s140 = sadd.s32 0, 0
    %s141 = smul.u32 25, %s140
    %s142 = sadd.s32 0, 0
    %s143 = smul.u32 25, %s142
    %p144 = scmp.lt.s32.totalorder %s143, 24
    %s145 = scalar_select %p144, %s143, 24
    %s146 = smul.addr %s145, 8
    %s147 = scalar_lea.vmem %s1, %s146
    %s148 = sadd.s32 0, 0
    %s149 = smul.u32 25, %s148
    %s150 = sadd.s32 0, 0
    %s151 = smul.u32 2, %s150
    %p152 = scmp.lt.s32.totalorder %s151, 1
    %s153 = scalar_select %p152, %s151, 1
    %s154 = smul.addr %s153, 2
    %s155 = scalar_lea.vmem %s2, %s154
    %s156 = sadd.s32 0, 0
    %s157 = smul.u32 2, %s156
    %s158 = sadd.s32 0, 0
    %s159 = smul.u32 2, %s158
    %p160 = scmp.lt.s32.totalorder %s159, 1
    %s161 = scalar_select %p160, %s159, 1
    %s162 = smul.addr %s161, 2
    %s163 = scalar_lea.vmem %s5, %s162
    %s164 = sadd.s32 0, 0
    %s165 = smul.u32 2, %s164
    %s166 = sadd.s32 0, 0
    %s167 = smul.u32 2, %s166
    %p168 = scmp.lt.s32.totalorder %s167, 1
    %s169 = scalar_select %p168, %s167, 1
    %s170 = smul.addr %s169, 2
    %s171 = scalar_lea.vmem %s6, %s170
    %s172 = sadd.s32 0, 0
    %s173 = smul.u32 2, %s172
    %s174 = sadd.s32 0, 0
    %s175 = smul.u32 2, %s174
    %p176 = scmp.lt.s32.totalorder %s175, 1
    %s177 = scalar_select %p176, %s175, 1
    %s178 = smul.addr %s177, 2
    %s179 = scalar_lea.vmem %s7, %s178
    %s180 = sadd.s32 0, 0
    %s181 = smul.u32 2, %s180
    %s182 = sadd.s32 0, 0
    %s183 = smul.u32 2, %s182
    %p184 = scmp.lt.s32.totalorder %s183, 1
    %s185 = scalar_select %p184, %s183, 1
    %s186 = smul.addr %s185, 2
    %s187 = scalar_lea.vmem %s8, %s186
    %s188 = sadd.s32 0, 0
    %s189 = smul.u32 2, %s188
    %p190 = scmp.eq.s32.totalorder 0, 0
    // Predicated region
    $region42: #{tpu_custom_call.1} parent=1 // pred_check
      %p191 = pneg %p190
    $region43: #{tpu_custom_call.1} parent=1 // pred_check_branch
      %193 = sbr.rel (%p191) target = $region45
    $region44: #{tpu_custom_call.1} parent=1 // pred_region
      %194 = vst [vmem:[#allocation2] sm:$0x1] 0.0
    $region45: #{tpu_custom_call.1} parent=1 // pred_fallthru
      _
    %v195 = vlaneseq
    %v196 = vand.u32 %v195, 127
    %p197 = scmp.eq.s32.totalorder 0, 0
    %p198 = pnand %p197, %p190
    %p199 = pneg %p198
    // Predicated region
    $region46: #{tpu_custom_call.1} parent=1 // pred_check
      _
    $region47: #{tpu_custom_call.1} parent=1 // pred_check_branch
      %201 = sbr.rel (%p198) target = $region49
    $region48: #{tpu_custom_call.1} parent=1 // pred_region
      %v202 = vld [vmem:[%s9] sm:$0x3]
      %vm203 = vcmp.ne.s32.totalorder %v202, 0
      %v204 = vld [vmem:[%s3] sm:$0x3]
      %v205 = vcvt.s32.f32 %v204
      %v206 = vadd.f32 %v205, 1.0
      %v207 = vlog2.pop %v206
      %v208 = vmul.f32 %v207, 0.6931472
      %v209 = vld [vmem:[%s4] sm:$0x3]
      %v210 = vsub.f32 %v208, %v209
      %v211 = vmul.f32 %v210, %v210
      %v212 = vsel %vm203, %v211, 0.0
      %vm213 = vcmask 189440
      %v214 = vsel %vm213, %v212, 0.0
      %215 = vadd.xlane.f32.xlu0 %v214
      %v216 = vpop.xlane.xlu0 %215
      %vm217 = vcmask 1041408
      %v218 = vsel %vm217, %v216, 0.0
      %v219 = vrot.slane %v218, 4
      %v220 = vadd.f32 %v218, %v219
      %v221 = vrot.slane %v220, 2
      %v222 = vadd.f32 %v220, %v221
      %v223 = vrot.slane %v222, 1
      %v224 = vadd.f32 %v222, %v223
      %v225 = vsel %vm203, 1, 0
      %v226 = vcvt.s32.f32 %v225
      %v227 = vsel %vm213, %v226, 0.0
      %228 = vadd.xlane.f32.xlu0 %v227
      %v229 = vpop.xlane.xlu0 %228
      %v230 = vsel %vm217, %v229, 0.0
      %v231 = vrot.slane %v230, 4
      %v232 = vadd.f32 %v230, %v231
      %v233 = vrot.slane %v232, 2
      %v234 = vadd.f32 %v232, %v233
      %v235 = vrot.slane %v234, 1
      %v236 = vadd.f32 %v234, %v235
      %vm237 = vcmp.eq.s32.totalorder %v196, 4
      %v238 = vsel %vm237, %v224, 0.0
      %vm239 = vcmp.eq.s32.totalorder %v196, 5
      %v240 = vsel %vm239, %v236, 0.0
      %v241 = vadd.f32 %v238, %v240
      %v242 = vld [vmem:[#allocation2] sm:$0x1]
      %v243 = vadd.f32 %v242, %v241
      %244 = vst [vmem:[#allocation2] sm:$0x1] %v243
    $region49: #{tpu_custom_call.1} parent=1 // pred_fallthru
      _
    %s245 = sadd.s32 0, 0
    %s246 = smul.u32 %s245, 200
    %v247 = vadd.s32 %v196, 128
    %v248 = vstv %s246
    %v249 = vadd.s32 %v248, %v196
    %v250 = vadd.s32 %v248, %v247
    %vm251 = vcmp.lt.s32.totalorder %v249, 200
    %vm252 = vcmp.lt.s32.totalorder %v250, 200
    %v253 = vld [vmem:[%s155] sm:$0xf]
    %vm254 = vcmp.ne.s32.totalorder %v253, 0
    %v255 = vsel %vm251, 1, 0
    %v256 = vsel %vm252, 1, 0
    %vm257 = vcmp.eq.s32.totalorder %v255, 1
    %vm258 = vcmp.eq.s32.totalorder %v256, 1
    %v259 = vsel %vm257, 1, 0
    %v260 = vsel %vm258, 1, 0
    %v261 = vrot.slane %v260, 6
    %vm262 = vcmask 1041408
    %v263 = vsel %vm262, %v259, %v261
    %vm264 = vcmp.ne.s32.totalorder %v263, 0
    %vm265 = vmand %vm254, %vm264
    %v266 = vld [vmem:[%s139] sm:$0xff]
    %v267 = vld [vmem:[%s139 + $0x8] sm:$0xff]
    %v268 = vld [vmem:[%s139 + $0x10] sm:$0xff]
    %v269 = vld [vmem:[%s139 + $0x18] sm:$0xff]
    %v270 = vld [vmem:[%s139 + $0x20] sm:$0xff]
    %v271 = vld [vmem:[%s139 + $0x28] sm:$0xff]
    %v272 = vld [vmem:[%s139 + $0x30] sm:$0xff]
    %v273 = vld [vmem:[%s139 + $0x38] sm:$0xff]
    %v274 = vld [vmem:[%s139 + $0x40] sm:$0xff]
    %v275 = vld [vmem:[%s139 + $0x48] sm:$0xff]
    %v276 = vld [vmem:[%s139 + $0x50] sm:$0xff]
    %v277 = vld [vmem:[%s139 + $0x58] sm:$0xff]
    %v278 = vld [vmem:[%s139 + $0x60] sm:$0xff]
    %v279 = vld [vmem:[%s139 + $0x68] sm:$0xff]
    %v280 = vld [vmem:[%s139 + $0x70] sm:$0xff]
    %v281 = vld [vmem:[%s139 + $0x78] sm:$0xff]
    %v282 = vld [vmem:[%s139 + $0x80] sm:$0xff]
    %v283 = vld [vmem:[%s139 + $0x88] sm:$0xff]
    %v284 = vld [vmem:[%s139 + $0x90] sm:$0xff]
    %v285 = vld [vmem:[%s139 + $0x98] sm:$0xff]
    %v286 = vld [vmem:[%s139 + $0xa0] sm:$0xff]
    %v287 = vld [vmem:[%s139 + $0xa8] sm:$0xff]
    %v288 = vld [vmem:[%s139 + $0xb0] sm:$0xff]
    %v289 = vld [vmem:[%s139 + $0xb8] sm:$0xff]
    %v290 = vld [vmem:[%s139 + $0xc0] sm:$0xff]
    %v291 = vld [vmem:[%s139 + $0xc8] sm:$0xff]
    %v292 = vld [vmem:[%s139 + $0xd0] sm:$0xff]
    %v293 = vld [vmem:[%s139 + $0xd8] sm:$0xff]
    %v294 = vld [vmem:[%s139 + $0xe0] sm:$0xff]
    %v295 = vld [vmem:[%s139 + $0xe8] sm:$0xff]
    %v296 = vld [vmem:[%s139 + $0xf0] sm:$0xff]
    %v297 = vld [vmem:[%s139 + $0xf8] sm:$0xff]
    %v298 = vld [vmem:[%s139 + $0x100] sm:$0xff]
    %v299 = vld [vmem:[%s139 + $0x108] sm:$0xff]
    %v300 = vld [vmem:[%s139 + $0x110] sm:$0xff]
    %v301 = vld [vmem:[%s139 + $0x118] sm:$0xff]
    %v302 = vld [vmem:[%s139 + $0x120] sm:$0xff]
    %v303 = vld [vmem:[%s139 + $0x128] sm:$0xff]
    %v304 = vld [vmem:[%s139 + $0x130] sm:$0xff]
    %v305 = vld [vmem:[%s139 + $0x138] sm:$0xff]
    %v306 = vld [vmem:[%s139 + $0x140] sm:$0xff]
    %v307 = vld [vmem:[%s139 + $0x148] sm:$0xff]
    %v308 = vld [vmem:[%s139 + $0x150] sm:$0xff]
    %v309 = vld [vmem:[%s139 + $0x158] sm:$0xff]
    %v310 = vld [vmem:[%s139 + $0x160] sm:$0xff]
    %v311 = vld [vmem:[%s139 + $0x168] sm:$0xff]
    %v312 = vld [vmem:[%s139 + $0x170] sm:$0xff]
    %v313 = vld [vmem:[%s139 + $0x178] sm:$0xff]
    %v314 = vld [vmem:[%s139 + $0x180] sm:$0xff]
    %v315 = vld [vmem:[%s139 + $0x188] sm:$0xff]
    %v316 = vld [vmem:[%s147] sm:$0xff]
    %v317 = vld [vmem:[%s147 + $0x8] sm:$0xff]
    %v318 = vld [vmem:[%s147 + $0x10] sm:$0xff]
    %v319 = vld [vmem:[%s147 + $0x18] sm:$0xff]
    %v320 = vld [vmem:[%s147 + $0x20] sm:$0xff]
    %v321 = vld [vmem:[%s147 + $0x28] sm:$0xff]
    %v322 = vld [vmem:[%s147 + $0x30] sm:$0xff]
    %v323 = vld [vmem:[%s147 + $0x38] sm:$0xff]
    %v324 = vld [vmem:[%s147 + $0x40] sm:$0xff]
    %v325 = vld [vmem:[%s147 + $0x48] sm:$0xff]
    %v326 = vld [vmem:[%s147 + $0x50] sm:$0xff]
    %v327 = vld [vmem:[%s147 + $0x58] sm:$0xff]
    %v328 = vld [vmem:[%s147 + $0x60] sm:$0xff]
    %v329 = vld [vmem:[%s147 + $0x68] sm:$0xff]
    %v330 = vld [vmem:[%s147 + $0x70] sm:$0xff]
    %v331 = vld [vmem:[%s147 + $0x78] sm:$0xff]
    %v332 = vld [vmem:[%s147 + $0x80] sm:$0xff]
    %v333 = vld [vmem:[%s147 + $0x88] sm:$0xff]
    %v334 = vld [vmem:[%s147 + $0x90] sm:$0xff]
    %v335 = vld [vmem:[%s147 + $0x98] sm:$0xff]
    %v336 = vld [vmem:[%s147 + $0xa0] sm:$0xff]
    %v337 = vld [vmem:[%s147 + $0xa8] sm:$0xff]
    %v338 = vld [vmem:[%s147 + $0xb0] sm:$0xff]
    %v339 = vld [vmem:[%s147 + $0xb8] sm:$0xff]
    %v340 = vld [vmem:[%s147 + $0xc0] sm:$0xff]
    %v341 = vld [vmem:[%s147 + $0xc8] sm:$0xff]
    %v342 = vld [vmem:[%s147 + $0xd0] sm:$0xff]
    %v343 = vld [vmem:[%s147 + $0xd8] sm:$0xff]
    %v344 = vld [vmem:[%s147 + $0xe0] sm:$0xff]
    %v345 = vld [vmem:[%s147 + $0xe8] sm:$0xff]
    %v346 = vld [vmem:[%s147 + $0xf0] sm:$0xff]
    %v347 = vld [vmem:[%s147 + $0xf8] sm:$0xff]
    %v348 = vld [vmem:[%s147 + $0x100] sm:$0xff]
    %v349 = vld [vmem:[%s147 + $0x108] sm:$0xff]
    %v350 = vld [vmem:[%s147 + $0x110] sm:$0xff]
    %v351 = vld [vmem:[%s147 + $0x118] sm:$0xff]
    %v352 = vld [vmem:[%s147 + $0x120] sm:$0xff]
    %v353 = vld [vmem:[%s147 + $0x128] sm:$0xff]
    %v354 = vld [vmem:[%s147 + $0x130] sm:$0xff]
    %v355 = vld [vmem:[%s147 + $0x138] sm:$0xff]
    %v356 = vld [vmem:[%s147 + $0x140] sm:$0xff]
    %v357 = vld [vmem:[%s147 + $0x148] sm:$0xff]
    %v358 = vld [vmem:[%s147 + $0x150] sm:$0xff]
    %v359 = vld [vmem:[%s147 + $0x158] sm:$0xff]
    %v360 = vld [vmem:[%s147 + $0x160] sm:$0xff]
    %v361 = vld [vmem:[%s147 + $0x168] sm:$0xff]
    %v362 = vld [vmem:[%s147 + $0x170] sm:$0xff]
    %v363 = vld [vmem:[%s147 + $0x178] sm:$0xff]
    %v364 = vld [vmem:[%s147 + $0x180] sm:$0xff]
    %v365 = vld [vmem:[%s147 + $0x188] sm:$0xff]
    %v366 = vsub.f32 %v266, %v316
    %v367 = vsub.f32 %v267, %v317
    %v368 = vsub.f32 %v268, %v318
    %v369 = vsub.f32 %v269, %v319
    %v370 = vsub.f32 %v270, %v320
    %v371 = vsub.f32 %v271, %v321
    %v372 = vsub.f32 %v272, %v322
    %v373 = vsub.f32 %v273, %v323
    %v374 = vsub.f32 %v274, %v324
    %v375 = vsub.f32 %v275, %v325
    %v376 = vsub.f32 %v276, %v326
    %v377 = vsub.f32 %v277, %v327
    %v378 = vsub.f32 %v278, %v328
    %v379 = vsub.f32 %v279, %v329
    %v380 = vsub.f32 %v280, %v330
    %v381 = vsub.f32 %v281, %v331
    %v382 = vsub.f32 %v282, %v332
    %v383 = vsub.f32 %v283, %v333
    %v384 = vsub.f32 %v284, %v334
    %v385 = vsub.f32 %v285, %v335
    %v386 = vsub.f32 %v286, %v336
    %v387 = vsub.f32 %v287, %v337
    %v388 = vsub.f32 %v288, %v338
    %v389 = vsub.f32 %v289, %v339
    %v390 = vsub.f32 %v290, %v340
    %v391 = vsub.f32 %v291, %v341
    %v392 = vsub.f32 %v292, %v342
    %v393 = vsub.f32 %v293, %v343
    %v394 = vsub.f32 %v294, %v344
    %v395 = vsub.f32 %v295, %v345
    %v396 = vsub.f32 %v296, %v346
    %v397 = vsub.f32 %v297, %v347
    %v398 = vsub.f32 %v298, %v348
    %v399 = vsub.f32 %v299, %v349
    %v400 = vsub.f32 %v300, %v350
    %v401 = vsub.f32 %v301, %v351
    %v402 = vsub.f32 %v302, %v352
    %v403 = vsub.f32 %v303, %v353
    %v404 = vsub.f32 %v304, %v354
    %v405 = vsub.f32 %v305, %v355
    %v406 = vsub.f32 %v306, %v356
    %v407 = vsub.f32 %v307, %v357
    %v408 = vsub.f32 %v308, %v358
    %v409 = vsub.f32 %v309, %v359
    %v410 = vsub.f32 %v310, %v360
    %v411 = vsub.f32 %v311, %v361
    %v412 = vsub.f32 %v312, %v362
    %v413 = vsub.f32 %v313, %v363
    %v414 = vsub.f32 %v314, %v364
    %v415 = vsub.f32 %v315, %v365
    %v416 = vand.u32 2147483647, %v366
    %v417 = vand.u32 2147483647, %v367
    %v418 = vand.u32 2147483647, %v368
    %v419 = vand.u32 2147483647, %v369
    %v420 = vand.u32 2147483647, %v370
    %v421 = vand.u32 2147483647, %v371
    %v422 = vand.u32 2147483647, %v372
    %v423 = vand.u32 2147483647, %v373
    %v424 = vand.u32 2147483647, %v374
    %v425 = vand.u32 2147483647, %v375
    %v426 = vand.u32 2147483647, %v376
    %v427 = vand.u32 2147483647, %v377
    %v428 = vand.u32 2147483647, %v378
    %v429 = vand.u32 2147483647, %v379
    %v430 = vand.u32 2147483647, %v380
    %v431 = vand.u32 2147483647, %v381
    %v432 = vand.u32 2147483647, %v382
    %v433 = vand.u32 2147483647, %v383
    %v434 = vand.u32 2147483647, %v384
    %v435 = vand.u32 2147483647, %v385
    %v436 = vand.u32 2147483647, %v386
    %v437 = vand.u32 2147483647, %v387
    %v438 = vand.u32 2147483647, %v388
    %v439 = vand.u32 2147483647, %v389
    %v440 = vand.u32 2147483647, %v390
    %v441 = vand.u32 2147483647, %v391
    %v442 = vand.u32 2147483647, %v392
    %v443 = vand.u32 2147483647, %v393
    %v444 = vand.u32 2147483647, %v394
    %v445 = vand.u32 2147483647, %v395
    %v446 = vand.u32 2147483647, %v396
    %v447 = vand.u32 2147483647, %v397
    %v448 = vand.u32 2147483647, %v398
    %v449 = vand.u32 2147483647, %v399
    %v450 = vand.u32 2147483647, %v400
    %v451 = vand.u32 2147483647, %v401
    %v452 = vand.u32 2147483647, %v402
    %v453 = vand.u32 2147483647, %v403
    %v454 = vand.u32 2147483647, %v404
    %v455 = vand.u32 2147483647, %v405
    %v456 = vand.u32 2147483647, %v406
    %v457 = vand.u32 2147483647, %v407
    %v458 = vand.u32 2147483647, %v408
    %v459 = vand.u32 2147483647, %v409
    %v460 = vand.u32 2147483647, %v410
    %v461 = vand.u32 2147483647, %v411
    %v462 = vand.u32 2147483647, %v412
    %v463 = vand.u32 2147483647, %v413
    %v464 = vand.u32 2147483647, %v414
    %v465 = vand.u32 2147483647, %v415
    %vm466 = vcmask 654336
    %v467 = vsel %vm466, %v416, 0.0
    %468 = vadd.xlane.f32.xlu0 %v467
    %v469 = vpop.xlane.xlu0 %468
    %v470 = vsel %vm466, %v417, 0.0
    %471 = vadd.xlane.f32.xlu0 %v470
    %v472 = vpop.xlane.xlu0 %471
    %v473 = vsel %vm466, %v418, 0.0
    %474 = vadd.xlane.f32.xlu0 %v473
    %v475 = vpop.xlane.xlu0 %474
    %v476 = vsel %vm466, %v419, 0.0
    %477 = vadd.xlane.f32.xlu0 %v476
    %v478 = vpop.xlane.xlu0 %477
    %v479 = vsel %vm466, %v420, 0.0
    %480 = vadd.xlane.f32.xlu0 %v479
    %v481 = vpop.xlane.xlu0 %480
    %v482 = vsel %vm466, %v421, 0.0
    %483 = vadd.xlane.f32.xlu0 %v482
    %v484 = vpop.xlane.xlu0 %483
    %v485 = vsel %vm466, %v422, 0.0
    %486 = vadd.xlane.f32.xlu0 %v485
    %v487 = vpop.xlane.xlu0 %486
    %v488 = vsel %vm466, %v423, 0.0
    %489 = vadd.xlane.f32.xlu0 %v488
    %v490 = vpop.xlane.xlu0 %489
    %v491 = vsel %vm466, %v424, 0.0
    %492 = vadd.xlane.f32.xlu0 %v491
    %v493 = vpop.xlane.xlu0 %492
    %v494 = vsel %vm466, %v425, 0.0
    %495 = vadd.xlane.f32.xlu0 %v494
    %v496 = vpop.xlane.xlu0 %495
    %v497 = vsel %vm466, %v426, 0.0
    %498 = vadd.xlane.f32.xlu0 %v497
    %v499 = vpop.xlane.xlu0 %498
    %v500 = vsel %vm466, %v427, 0.0
    %501 = vadd.xlane.f32.xlu0 %v500
    %v502 = vpop.xlane.xlu0 %501
    %v503 = vsel %vm466, %v428, 0.0
    %504 = vadd.xlane.f32.xlu0 %v503
    %v505 = vpop.xlane.xlu0 %504
    %v506 = vsel %vm466, %v429, 0.0
    %507 = vadd.xlane.f32.xlu0 %v506
    %v508 = vpop.xlane.xlu0 %507
    %v509 = vsel %vm466, %v430, 0.0
    %510 = vadd.xlane.f32.xlu0 %v509
    %v511 = vpop.xlane.xlu0 %510
    %v512 = vsel %vm466, %v431, 0.0
    %513 = vadd.xlane.f32.xlu0 %v512
    %v514 = vpop.xlane.xlu0 %513
    %v515 = vsel %vm466, %v432, 0.0
    %516 = vadd.xlane.f32.xlu0 %v515
    %v517 = vpop.xlane.xlu0 %516
    %v518 = vsel %vm466, %v433, 0.0
    %519 = vadd.xlane.f32.xlu0 %v518
    %v520 = vpop.xlane.xlu0 %519
    %v521 = vsel %vm466, %v434, 0.0
    %522 = vadd.xlane.f32.xlu0 %v521
    %v523 = vpop.xlane.xlu0 %522
    %v524 = vsel %vm466, %v435, 0.0
    %525 = vadd.xlane.f32.xlu0 %v524
    %v526 = vpop.xlane.xlu0 %525
    %v527 = vsel %vm466, %v436, 0.0
    %528 = vadd.xlane.f32.xlu0 %v527
    %v529 = vpop.xlane.xlu0 %528
    %v530 = vsel %vm466, %v437, 0.0
    %531 = vadd.xlane.f32.xlu0 %v530
    %v532 = vpop.xlane.xlu0 %531
    %v533 = vsel %vm466, %v438, 0.0
    %534 = vadd.xlane.f32.xlu0 %v533
    %v535 = vpop.xlane.xlu0 %534
    %v536 = vsel %vm466, %v439, 0.0
    %537 = vadd.xlane.f32.xlu0 %v536
    %v538 = vpop.xlane.xlu0 %537
    %v539 = vsel %vm466, %v440, 0.0
    %540 = vadd.xlane.f32.xlu0 %v539
    %v541 = vpop.xlane.xlu0 %540
    %v542 = vsel %vm466, %v441, 0.0
    %543 = vadd.xlane.f32.xlu0 %v542
    %v544 = vpop.xlane.xlu0 %543
    %v545 = vsel %vm466, %v442, 0.0
    %546 = vadd.xlane.f32.xlu0 %v545
    %v547 = vpop.xlane.xlu0 %546
    %v548 = vsel %vm466, %v443, 0.0
    %549 = vadd.xlane.f32.xlu0 %v548
    %v550 = vpop.xlane.xlu0 %549
    %v551 = vsel %vm466, %v444, 0.0
    %552 = vadd.xlane.f32.xlu0 %v551
    %v553 = vpop.xlane.xlu0 %552
    %v554 = vsel %vm466, %v445, 0.0
    %555 = vadd.xlane.f32.xlu0 %v554
    %v556 = vpop.xlane.xlu0 %555
    %v557 = vsel %vm466, %v446, 0.0
    %558 = vadd.xlane.f32.xlu0 %v557
    %v559 = vpop.xlane.xlu0 %558
    %v560 = vsel %vm466, %v447, 0.0
    %561 = vadd.xlane.f32.xlu0 %v560
    %v562 = vpop.xlane.xlu0 %561
    %v563 = vsel %vm466, %v448, 0.0
    %564 = vadd.xlane.f32.xlu0 %v563
    %v565 = vpop.xlane.xlu0 %564
    %v566 = vsel %vm466, %v449, 0.0
    %567 = vadd.xlane.f32.xlu0 %v566
    %v568 = vpop.xlane.xlu0 %567
    %v569 = vsel %vm466, %v450, 0.0
    %570 = vadd.xlane.f32.xlu0 %v569
    %v571 = vpop.xlane.xlu0 %570
    %v572 = vsel %vm466, %v451, 0.0
    %573 = vadd.xlane.f32.xlu0 %v572
    %v574 = vpop.xlane.xlu0 %573
    %v575 = vsel %vm466, %v452, 0.0
    %576 = vadd.xlane.f32.xlu0 %v575
    %v577 = vpop.xlane.xlu0 %576
    %v578 = vsel %vm466, %v453, 0.0
    %579 = vadd.xlane.f32.xlu0 %v578
    %v580 = vpop.xlane.xlu0 %579
    %v581 = vsel %vm466, %v454, 0.0
    %582 = vadd.xlane.f32.xlu0 %v581
    %v583 = vpop.xlane.xlu0 %582
    %v584 = vsel %vm466, %v455, 0.0
    %585 = vadd.xlane.f32.xlu0 %v584
    %v586 = vpop.xlane.xlu0 %585
    %v587 = vsel %vm466, %v456, 0.0
    %588 = vadd.xlane.f32.xlu0 %v587
    %v589 = vpop.xlane.xlu0 %588
    %v590 = vsel %vm466, %v457, 0.0
    %591 = vadd.xlane.f32.xlu0 %v590
    %v592 = vpop.xlane.xlu0 %591
    %v593 = vsel %vm466, %v458, 0.0
    %594 = vadd.xlane.f32.xlu0 %v593
    %v595 = vpop.xlane.xlu0 %594
    %v596 = vsel %vm466, %v459, 0.0
    %597 = vadd.xlane.f32.xlu0 %v596
    %v598 = vpop.xlane.xlu0 %597
    %v599 = vsel %vm466, %v460, 0.0
    %600 = vadd.xlane.f32.xlu0 %v599
    %v601 = vpop.xlane.xlu0 %600
    %v602 = vsel %vm466, %v461, 0.0
    %603 = vadd.xlane.f32.xlu0 %v602
    %v604 = vpop.xlane.xlu0 %603
    %v605 = vsel %vm466, %v462, 0.0
    %606 = vadd.xlane.f32.xlu0 %v605
    %v607 = vpop.xlane.xlu0 %606
    %v608 = vsel %vm466, %v463, 0.0
    %609 = vadd.xlane.f32.xlu0 %v608
    %v610 = vpop.xlane.xlu0 %609
    %v611 = vsel %vm466, %v464, 0.0
    %612 = vadd.xlane.f32.xlu0 %v611
    %v613 = vpop.xlane.xlu0 %612
    %v614 = vsel %vm466, %v465, 0.0
    %615 = vadd.xlane.f32.xlu0 %v614
    %v616 = vpop.xlane.xlu0 %615
    %v617 = vld [vmem:[%s171] sm:$0xf]
    %v618 = vld [vmem:[%s163] sm:$0xf]
    %v619 = vsub.f32 %v617, %v618
    %v620 = vld [vmem:[%s187] sm:$0xf]
    %v621 = vld [vmem:[%s179] sm:$0xf]
    %v622 = vsub.f32 %v620, %v621
    %v674 = vunpack.c.l.s4 269488144
    %v675 = vunpack.c.0.s8 %v674
    %v676 = vperm.slane %v469, %v675
    %v678 = vunpack.c.l.s4 842150450
    %v679 = vunpack.c.0.s8 %v678
    %v680 = vperm.slane %v469, %v679
    %v682 = vunpack.c.l.s4 1414812756
    %v683 = vunpack.c.0.s8 %v682
    %v684 = vperm.slane %v469, %v683
    %v686 = vunpack.c.l.s4 1987475062
    %v687 = vunpack.c.0.s8 %v686
    %v688 = vperm.slane %v469, %v687
    %v690 = vunpack.c.l.s4 269488144
    %v691 = vunpack.c.0.s8 %v690
    %v692 = vperm.slane %v472, %v691
    %v694 = vunpack.c.l.s4 842150450
    %v695 = vunpack.c.0.s8 %v694
    %v696 = vperm.slane %v472, %v695
    %v698 = vunpack.c.l.s4 1414812756
    %v699 = vunpack.c.0.s8 %v698
    %v700 = vperm.slane %v472, %v699
    %v702 = vunpack.c.l.s4 1987475062
    %v703 = vunpack.c.0.s8 %v702
    %v704 = vperm.slane %v472, %v703
    %v706 = vunpack.c.l.s4 269488144
    %v707 = vunpack.c.0.s8 %v706
    %v708 = vperm.slane %v475, %v707
    %v710 = vunpack.c.l.s4 842150450
    %v711 = vunpack.c.0.s8 %v710
    %v712 = vperm.slane %v475, %v711
    %v714 = vunpack.c.l.s4 1414812756
    %v715 = vunpack.c.0.s8 %v714
    %v716 = vperm.slane %v475, %v715
    %v718 = vunpack.c.l.s4 1987475062
    %v719 = vunpack.c.0.s8 %v718
    %v720 = vperm.slane %v475, %v719
    %v722 = vunpack.c.l.s4 269488144
    %v723 = vunpack.c.0.s8 %v722
    %v724 = vperm.slane %v478, %v723
    %v726 = vunpack.c.l.s4 842150450
    %v727 = vunpack.c.0.s8 %v726
    %v728 = vperm.slane %v478, %v727
    %v730 = vunpack.c.l.s4 1414812756
    %v731 = vunpack.c.0.s8 %v730
    %v732 = vperm.slane %v478, %v731
    %v734 = vunpack.c.l.s4 1987475062
    %v735 = vunpack.c.0.s8 %v734
    %v736 = vperm.slane %v478, %v735
    %v738 = vunpack.c.l.s4 269488144
    %v739 = vunpack.c.0.s8 %v738
    %v740 = vperm.slane %v481, %v739
    %v742 = vunpack.c.l.s4 842150450
    %v743 = vunpack.c.0.s8 %v742
    %v744 = vperm.slane %v481, %v743
    %v746 = vunpack.c.l.s4 1414812756
    %v747 = vunpack.c.0.s8 %v746
    %v748 = vperm.slane %v481, %v747
    %v750 = vunpack.c.l.s4 1987475062
    %v751 = vunpack.c.0.s8 %v750
    %v752 = vperm.slane %v481, %v751
    %v754 = vunpack.c.l.s4 269488144
    %v755 = vunpack.c.0.s8 %v754
    %v756 = vperm.slane %v484, %v755
    %v758 = vunpack.c.l.s4 842150450
    %v759 = vunpack.c.0.s8 %v758
    %v760 = vperm.slane %v484, %v759
    %v762 = vunpack.c.l.s4 1414812756
    %v763 = vunpack.c.0.s8 %v762
    %v764 = vperm.slane %v484, %v763
    %v766 = vunpack.c.l.s4 1987475062
    %v767 = vunpack.c.0.s8 %v766
    %v768 = vperm.slane %v484, %v767
    %v770 = vunpack.c.l.s4 269488144
    %v771 = vunpack.c.0.s8 %v770
    %v772 = vperm.slane %v487, %v771
    %v774 = vunpack.c.l.s4 842150450
    %v775 = vunpack.c.0.s8 %v774
    %v776 = vperm.slane %v487, %v775
    %v778 = vunpack.c.l.s4 1414812756
    %v779 = vunpack.c.0.s8 %v778
    %v780 = vperm.slane %v487, %v779
    %v782 = vunpack.c.l.s4 1987475062
    %v783 = vunpack.c.0.s8 %v782
    %v784 = vperm.slane %v487, %v783
    %v786 = vunpack.c.l.s4 269488144
    %v787 = vunpack.c.0.s8 %v786
    %v788 = vperm.slane %v490, %v787
    %v790 = vunpack.c.l.s4 842150450
    %v791 = vunpack.c.0.s8 %v790
    %v792 = vperm.slane %v490, %v791
    %v794 = vunpack.c.l.s4 1414812756
    %v795 = vunpack.c.0.s8 %v794
    %v796 = vperm.slane %v490, %v795
    %v798 = vunpack.c.l.s4 1987475062
    %v799 = vunpack.c.0.s8 %v798
    %v800 = vperm.slane %v490, %v799
    %v802 = vunpack.c.l.s4 269488144
    %v803 = vunpack.c.0.s8 %v802
    %v804 = vperm.slane %v493, %v803
    %v806 = vunpack.c.l.s4 842150450
    %v807 = vunpack.c.0.s8 %v806
    %v808 = vperm.slane %v493, %v807
    %v810 = vunpack.c.l.s4 1414812756
    %v811 = vunpack.c.0.s8 %v810
    %v812 = vperm.slane %v493, %v811
    %v814 = vunpack.c.l.s4 1987475062
    %v815 = vunpack.c.0.s8 %v814
    %v816 = vperm.slane %v493, %v815
    %v818 = vunpack.c.l.s4 269488144
    %v819 = vunpack.c.0.s8 %v818
    %v820 = vperm.slane %v496, %v819
    %v822 = vunpack.c.l.s4 842150450
    %v823 = vunpack.c.0.s8 %v822
    %v824 = vperm.slane %v496, %v823
    %v826 = vunpack.c.l.s4 1414812756
    %v827 = vunpack.c.0.s8 %v826
    %v828 = vperm.slane %v496, %v827
    %v830 = vunpack.c.l.s4 1987475062
    %v831 = vunpack.c.0.s8 %v830
    %v832 = vperm.slane %v496, %v831
    %v834 = vunpack.c.l.s4 269488144
    %v835 = vunpack.c.0.s8 %v834
    %v836 = vperm.slane %v499, %v835
    %v838 = vunpack.c.l.s4 842150450
    %v839 = vunpack.c.0.s8 %v838
    %v840 = vperm.slane %v499, %v839
    %v842 = vunpack.c.l.s4 1414812756
    %v843 = vunpack.c.0.s8 %v842
    %v844 = vperm.slane %v499, %v843
    %v846 = vunpack.c.l.s4 1987475062
    %v847 = vunpack.c.0.s8 %v846
    %v848 = vperm.slane %v499, %v847
    %v850 = vunpack.c.l.s4 269488144
    %v851 = vunpack.c.0.s8 %v850
    %v852 = vperm.slane %v502, %v851
    %v854 = vunpack.c.l.s4 842150450
    %v855 = vunpack.c.0.s8 %v854
    %v856 = vperm.slane %v502, %v855
    %v858 = vunpack.c.l.s4 1414812756
    %v859 = vunpack.c.0.s8 %v858
    %v860 = vperm.slane %v502, %v859
    %v862 = vunpack.c.l.s4 1987475062
    %v863 = vunpack.c.0.s8 %v862
    %v864 = vperm.slane %v502, %v863
    %v866 = vunpack.c.l.s4 269488144
    %v867 = vunpack.c.0.s8 %v866
    %v868 = vperm.slane %v505, %v867
    %v870 = vunpack.c.l.s4 842150450
    %v871 = vunpack.c.0.s8 %v870
    %v872 = vperm.slane %v505, %v871
    %v874 = vunpack.c.l.s4 1414812756
    %v875 = vunpack.c.0.s8 %v874
    %v876 = vperm.slane %v505, %v875
    %v878 = vunpack.c.l.s4 1987475062
    %v879 = vunpack.c.0.s8 %v878
    %v880 = vperm.slane %v505, %v879
    %v882 = vunpack.c.l.s4 269488144
    %v883 = vunpack.c.0.s8 %v882
    %v884 = vperm.slane %v508, %v883
    %v886 = vunpack.c.l.s4 842150450
    %v887 = vunpack.c.0.s8 %v886
    %v888 = vperm.slane %v508, %v887
    %v890 = vunpack.c.l.s4 1414812756
    %v891 = vunpack.c.0.s8 %v890
    %v892 = vperm.slane %v508, %v891
    %v894 = vunpack.c.l.s4 1987475062
    %v895 = vunpack.c.0.s8 %v894
    %v896 = vperm.slane %v508, %v895
    %v898 = vunpack.c.l.s4 269488144
    %v899 = vunpack.c.0.s8 %v898
    %v900 = vperm.slane %v511, %v899
    %v902 = vunpack.c.l.s4 842150450
    %v903 = vunpack.c.0.s8 %v902
    %v904 = vperm.slane %v511, %v903
    %v906 = vunpack.c.l.s4 1414812756
    %v907 = vunpack.c.0.s8 %v906
    %v908 = vperm.slane %v511, %v907
    %v910 = vunpack.c.l.s4 1987475062
    %v911 = vunpack.c.0.s8 %v910
    %v912 = vperm.slane %v511, %v911
    %v914 = vunpack.c.l.s4 269488144
    %v915 = vunpack.c.0.s8 %v914
    %v916 = vperm.slane %v514, %v915
    %v918 = vunpack.c.l.s4 842150450
    %v919 = vunpack.c.0.s8 %v918
    %v920 = vperm.slane %v514, %v919
    %v922 = vunpack.c.l.s4 1414812756
    %v923 = vunpack.c.0.s8 %v922
    %v924 = vperm.slane %v514, %v923
    %v926 = vunpack.c.l.s4 1987475062
    %v927 = vunpack.c.0.s8 %v926
    %v928 = vperm.slane %v514, %v927
    %v930 = vunpack.c.l.s4 269488144
    %v931 = vunpack.c.0.s8 %v930
    %v932 = vperm.slane %v517, %v931
    %v934 = vunpack.c.l.s4 842150450
    %v935 = vunpack.c.0.s8 %v934
    %v936 = vperm.slane %v517, %v935
    %v938 = vunpack.c.l.s4 1414812756
    %v939 = vunpack.c.0.s8 %v938
    %v940 = vperm.slane %v517, %v939
    %v942 = vunpack.c.l.s4 1987475062
    %v943 = vunpack.c.0.s8 %v942
    %v944 = vperm.slane %v517, %v943
    %v946 = vunpack.c.l.s4 269488144
    %v947 = vunpack.c.0.s8 %v946
    %v948 = vperm.slane %v520, %v947
    %v950 = vunpack.c.l.s4 842150450
    %v951 = vunpack.c.0.s8 %v950
    %v952 = vperm.slane %v520, %v951
    %v954 = vunpack.c.l.s4 1414812756
    %v955 = vunpack.c.0.s8 %v954
    %v956 = vperm.slane %v520, %v955
    %v958 = vunpack.c.l.s4 1987475062
    %v959 = vunpack.c.0.s8 %v958
    %v960 = vperm.slane %v520, %v959
    %v962 = vunpack.c.l.s4 269488144
    %v963 = vunpack.c.0.s8 %v962
    %v964 = vperm.slane %v523, %v963
    %v966 = vunpack.c.l.s4 842150450
    %v967 = vunpack.c.0.s8 %v966
    %v968 = vperm.slane %v523, %v967
    %v970 = vunpack.c.l.s4 1414812756
    %v971 = vunpack.c.0.s8 %v970
    %v972 = vperm.slane %v523, %v971
    %v974 = vunpack.c.l.s4 1987475062
    %v975 = vunpack.c.0.s8 %v974
    %v976 = vperm.slane %v523, %v975
    %v978 = vunpack.c.l.s4 269488144
    %v979 = vunpack.c.0.s8 %v978
    %v980 = vperm.slane %v526, %v979
    %v982 = vunpack.c.l.s4 842150450
    %v983 = vunpack.c.0.s8 %v982
    %v984 = vperm.slane %v526, %v983
    %v986 = vunpack.c.l.s4 1414812756
    %v987 = vunpack.c.0.s8 %v986
    %v988 = vperm.slane %v526, %v987
    %v990 = vunpack.c.l.s4 1987475062
    %v991 = vunpack.c.0.s8 %v990
    %v992 = vperm.slane %v526, %v991
    %v994 = vunpack.c.l.s4 269488144
    %v995 = vunpack.c.0.s8 %v994
    %v996 = vperm.slane %v529, %v995
    %v998 = vunpack.c.l.s4 842150450
    %v999 = vunpack.c.0.s8 %v998
    %v1000 = vperm.slane %v529, %v999
    %v1002 = vunpack.c.l.s4 1414812756
    %v1003 = vunpack.c.0.s8 %v1002
    %v1004 = vperm.slane %v529, %v1003
    %v1006 = vunpack.c.l.s4 1987475062
    %v1007 = vunpack.c.0.s8 %v1006
    %v1008 = vperm.slane %v529, %v1007
    %v1010 = vunpack.c.l.s4 269488144
    %v1011 = vunpack.c.0.s8 %v1010
    %v1012 = vperm.slane %v532, %v1011
    %v1014 = vunpack.c.l.s4 842150450
    %v1015 = vunpack.c.0.s8 %v1014
    %v1016 = vperm.slane %v532, %v1015
    %v1018 = vunpack.c.l.s4 1414812756
    %v1019 = vunpack.c.0.s8 %v1018
    %v1020 = vperm.slane %v532, %v1019
    %v1022 = vunpack.c.l.s4 1987475062
    %v1023 = vunpack.c.0.s8 %v1022
    %v1024 = vperm.slane %v532, %v1023
    %v1026 = vunpack.c.l.s4 269488144
    %v1027 = vunpack.c.0.s8 %v1026
    %v1028 = vperm.slane %v535, %v1027
    %v1030 = vunpack.c.l.s4 842150450
    %v1031 = vunpack.c.0.s8 %v1030
    %v1032 = vperm.slane %v535, %v1031
    %v1034 = vunpack.c.l.s4 1414812756
    %v1035 = vunpack.c.0.s8 %v1034
    %v1036 = vperm.slane %v535, %v1035
    %v1038 = vunpack.c.l.s4 1987475062
    %v1039 = vunpack.c.0.s8 %v1038
    %v1040 = vperm.slane %v535, %v1039
    %v1042 = vunpack.c.l.s4 269488144
    %v1043 = vunpack.c.0.s8 %v1042
    %v1044 = vperm.slane %v538, %v1043
    %v1046 = vunpack.c.l.s4 842150450
    %v1047 = vunpack.c.0.s8 %v1046
    %v1048 = vperm.slane %v538, %v1047
    %v1050 = vunpack.c.l.s4 1414812756
    %v1051 = vunpack.c.0.s8 %v1050
    %v1052 = vperm.slane %v538, %v1051
    %v1054 = vunpack.c.l.s4 1987475062
    %v1055 = vunpack.c.0.s8 %v1054
    %v1056 = vperm.slane %v538, %v1055
    %v1058 = vunpack.c.l.s4 269488144
    %v1059 = vunpack.c.0.s8 %v1058
    %v1060 = vperm.slane %v541, %v1059
    %v1062 = vunpack.c.l.s4 842150450
    %v1063 = vunpack.c.0.s8 %v1062
    %v1064 = vperm.slane %v541, %v1063
    %v1066 = vunpack.c.l.s4 1414812756
    %v1067 = vunpack.c.0.s8 %v1066
    %v1068 = vperm.slane %v541, %v1067
    %v1070 = vunpack.c.l.s4 1987475062
    %v1071 = vunpack.c.0.s8 %v1070
    %v1072 = vperm.slane %v541, %v1071
    %v1074 = vunpack.c.l.s4 269488144
    %v1075 = vunpack.c.0.s8 %v1074
    %v1076 = vperm.slane %v544, %v1075
    %v1078 = vunpack.c.l.s4 842150450
    %v1079 = vunpack.c.0.s8 %v1078
    %v1080 = vperm.slane %v544, %v1079
    %v1082 = vunpack.c.l.s4 1414812756
    %v1083 = vunpack.c.0.s8 %v1082
    %v1084 = vperm.slane %v544, %v1083
    %v1086 = vunpack.c.l.s4 1987475062
    %v1087 = vunpack.c.0.s8 %v1086
    %v1088 = vperm.slane %v544, %v1087
    %v1090 = vunpack.c.l.s4 269488144
    %v1091 = vunpack.c.0.s8 %v1090
    %v1092 = vperm.slane %v547, %v1091
    %v1094 = vunpack.c.l.s4 842150450
    %v1095 = vunpack.c.0.s8 %v1094
    %v1096 = vperm.slane %v547, %v1095
    %v1098 = vunpack.c.l.s4 1414812756
    %v1099 = vunpack.c.0.s8 %v1098
    %v1100 = vperm.slane %v547, %v1099
    %v1102 = vunpack.c.l.s4 1987475062
    %v1103 = vunpack.c.0.s8 %v1102
    %v1104 = vperm.slane %v547, %v1103
    %v1106 = vunpack.c.l.s4 269488144
    %v1107 = vunpack.c.0.s8 %v1106
    %v1108 = vperm.slane %v550, %v1107
    %v1110 = vunpack.c.l.s4 842150450
    %v1111 = vunpack.c.0.s8 %v1110
    %v1112 = vperm.slane %v550, %v1111
    %v1114 = vunpack.c.l.s4 1414812756
    %v1115 = vunpack.c.0.s8 %v1114
    %v1116 = vperm.slane %v550, %v1115
    %v1118 = vunpack.c.l.s4 1987475062
    %v1119 = vunpack.c.0.s8 %v1118
    %v1120 = vperm.slane %v550, %v1119
    %v1122 = vunpack.c.l.s4 269488144
    %v1123 = vunpack.c.0.s8 %v1122
    %v1124 = vperm.slane %v553, %v1123
    %v1126 = vunpack.c.l.s4 842150450
    %v1127 = vunpack.c.0.s8 %v1126
    %v1128 = vperm.slane %v553, %v1127
    %v1130 = vunpack.c.l.s4 1414812756
    %v1131 = vunpack.c.0.s8 %v1130
    %v1132 = vperm.slane %v553, %v1131
    %v1134 = vunpack.c.l.s4 1987475062
    %v1135 = vunpack.c.0.s8 %v1134
    %v1136 = vperm.slane %v553, %v1135
    %v1138 = vunpack.c.l.s4 269488144
    %v1139 = vunpack.c.0.s8 %v1138
    %v1140 = vperm.slane %v556, %v1139
    %v1142 = vunpack.c.l.s4 842150450
    %v1143 = vunpack.c.0.s8 %v1142
    %v1144 = vperm.slane %v556, %v1143
    %v1146 = vunpack.c.l.s4 1414812756
    %v1147 = vunpack.c.0.s8 %v1146
    %v1148 = vperm.slane %v556, %v1147
    %v1150 = vunpack.c.l.s4 1987475062
    %v1151 = vunpack.c.0.s8 %v1150
    %v1152 = vperm.slane %v556, %v1151
    %v1154 = vunpack.c.l.s4 269488144
    %v1155 = vunpack.c.0.s8 %v1154
    %v1156 = vperm.slane %v559, %v1155
    %v1158 = vunpack.c.l.s4 842150450
    %v1159 = vunpack.c.0.s8 %v1158
    %v1160 = vperm.slane %v559, %v1159
    %v1162 = vunpack.c.l.s4 1414812756
    %v1163 = vunpack.c.0.s8 %v1162
    %v1164 = vperm.slane %v559, %v1163
    %v1166 = vunpack.c.l.s4 1987475062
    %v1167 = vunpack.c.0.s8 %v1166
    %v1168 = vperm.slane %v559, %v1167
    %v1170 = vunpack.c.l.s4 269488144
    %v1171 = vunpack.c.0.s8 %v1170
    %v1172 = vperm.slane %v562, %v1171
    %v1174 = vunpack.c.l.s4 842150450
    %v1175 = vunpack.c.0.s8 %v1174
    %v1176 = vperm.slane %v562, %v1175
    %v1178 = vunpack.c.l.s4 1414812756
    %v1179 = vunpack.c.0.s8 %v1178
    %v1180 = vperm.slane %v562, %v1179
    %v1182 = vunpack.c.l.s4 1987475062
    %v1183 = vunpack.c.0.s8 %v1182
    %v1184 = vperm.slane %v562, %v1183
    %v1186 = vunpack.c.l.s4 269488144
    %v1187 = vunpack.c.0.s8 %v1186
    %v1188 = vperm.slane %v565, %v1187
    %v1190 = vunpack.c.l.s4 842150450
    %v1191 = vunpack.c.0.s8 %v1190
    %v1192 = vperm.slane %v565, %v1191
    %v1194 = vunpack.c.l.s4 1414812756
    %v1195 = vunpack.c.0.s8 %v1194
    %v1196 = vperm.slane %v565, %v1195
    %v1198 = vunpack.c.l.s4 1987475062
    %v1199 = vunpack.c.0.s8 %v1198
    %v1200 = vperm.slane %v565, %v1199
    %v1202 = vunpack.c.l.s4 269488144
    %v1203 = vunpack.c.0.s8 %v1202
    %v1204 = vperm.slane %v568, %v1203
    %v1206 = vunpack.c.l.s4 842150450
    %v1207 = vunpack.c.0.s8 %v1206
    %v1208 = vperm.slane %v568, %v1207
    %v1210 = vunpack.c.l.s4 1414812756
    %v1211 = vunpack.c.0.s8 %v1210
    %v1212 = vperm.slane %v568, %v1211
    %v1214 = vunpack.c.l.s4 1987475062
    %v1215 = vunpack.c.0.s8 %v1214
    %v1216 = vperm.slane %v568, %v1215
    %v1218 = vunpack.c.l.s4 269488144
    %v1219 = vunpack.c.0.s8 %v1218
    %v1220 = vperm.slane %v571, %v1219
    %v1222 = vunpack.c.l.s4 842150450
    %v1223 = vunpack.c.0.s8 %v1222
    %v1224 = vperm.slane %v571, %v1223
    %v1226 = vunpack.c.l.s4 1414812756
    %v1227 = vunpack.c.0.s8 %v1226
    %v1228 = vperm.slane %v571, %v1227
    %v1230 = vunpack.c.l.s4 1987475062
    %v1231 = vunpack.c.0.s8 %v1230
    %v1232 = vperm.slane %v571, %v1231
    %v1234 = vunpack.c.l.s4 269488144
    %v1235 = vunpack.c.0.s8 %v1234
    %v1236 = vperm.slane %v574, %v1235
    %v1238 = vunpack.c.l.s4 842150450
    %v1239 = vunpack.c.0.s8 %v1238
    %v1240 = vperm.slane %v574, %v1239
    %v1242 = vunpack.c.l.s4 1414812756
    %v1243 = vunpack.c.0.s8 %v1242
    %v1244 = vperm.slane %v574, %v1243
    %v1246 = vunpack.c.l.s4 1987475062
    %v1247 = vunpack.c.0.s8 %v1246
    %v1248 = vperm.slane %v574, %v1247
    %v1250 = vunpack.c.l.s4 269488144
    %v1251 = vunpack.c.0.s8 %v1250
    %v1252 = vperm.slane %v577, %v1251
    %v1254 = vunpack.c.l.s4 842150450
    %v1255 = vunpack.c.0.s8 %v1254
    %v1256 = vperm.slane %v577, %v1255
    %v1258 = vunpack.c.l.s4 1414812756
    %v1259 = vunpack.c.0.s8 %v1258
    %v1260 = vperm.slane %v577, %v1259
    %v1262 = vunpack.c.l.s4 1987475062
    %v1263 = vunpack.c.0.s8 %v1262
    %v1264 = vperm.slane %v577, %v1263
    %v1266 = vunpack.c.l.s4 269488144
    %v1267 = vunpack.c.0.s8 %v1266
    %v1268 = vperm.slane %v580, %v1267
    %v1270 = vunpack.c.l.s4 842150450
    %v1271 = vunpack.c.0.s8 %v1270
    %v1272 = vperm.slane %v580, %v1271
    %v1274 = vunpack.c.l.s4 1414812756
    %v1275 = vunpack.c.0.s8 %v1274
    %v1276 = vperm.slane %v580, %v1275
    %v1278 = vunpack.c.l.s4 1987475062
    %v1279 = vunpack.c.0.s8 %v1278
    %v1280 = vperm.slane %v580, %v1279
    %v1282 = vunpack.c.l.s4 269488144
    %v1283 = vunpack.c.0.s8 %v1282
    %v1284 = vperm.slane %v583, %v1283
    %v1286 = vunpack.c.l.s4 842150450
    %v1287 = vunpack.c.0.s8 %v1286
    %v1288 = vperm.slane %v583, %v1287
    %v1290 = vunpack.c.l.s4 1414812756
    %v1291 = vunpack.c.0.s8 %v1290
    %v1292 = vperm.slane %v583, %v1291
    %v1294 = vunpack.c.l.s4 1987475062
    %v1295 = vunpack.c.0.s8 %v1294
    %v1296 = vperm.slane %v583, %v1295
    %v1298 = vunpack.c.l.s4 269488144
    %v1299 = vunpack.c.0.s8 %v1298
    %v1300 = vperm.slane %v586, %v1299
    %v1302 = vunpack.c.l.s4 842150450
    %v1303 = vunpack.c.0.s8 %v1302
    %v1304 = vperm.slane %v586, %v1303
    %v1306 = vunpack.c.l.s4 1414812756
    %v1307 = vunpack.c.0.s8 %v1306
    %v1308 = vperm.slane %v586, %v1307
    %v1310 = vunpack.c.l.s4 1987475062
    %v1311 = vunpack.c.0.s8 %v1310
    %v1312 = vperm.slane %v586, %v1311
    %v1314 = vunpack.c.l.s4 269488144
    %v1315 = vunpack.c.0.s8 %v1314
    %v1316 = vperm.slane %v589, %v1315
    %v1318 = vunpack.c.l.s4 842150450
    %v1319 = vunpack.c.0.s8 %v1318
    %v1320 = vperm.slane %v589, %v1319
    %v1322 = vunpack.c.l.s4 1414812756
    %v1323 = vunpack.c.0.s8 %v1322
    %v1324 = vperm.slane %v589, %v1323
    %v1326 = vunpack.c.l.s4 1987475062
    %v1327 = vunpack.c.0.s8 %v1326
    %v1328 = vperm.slane %v589, %v1327
    %v1330 = vunpack.c.l.s4 269488144
    %v1331 = vunpack.c.0.s8 %v1330
    %v1332 = vperm.slane %v592, %v1331
    %v1334 = vunpack.c.l.s4 842150450
    %v1335 = vunpack.c.0.s8 %v1334
    %v1336 = vperm.slane %v592, %v1335
    %v1338 = vunpack.c.l.s4 1414812756
    %v1339 = vunpack.c.0.s8 %v1338
    %v1340 = vperm.slane %v592, %v1339
    %v1342 = vunpack.c.l.s4 1987475062
    %v1343 = vunpack.c.0.s8 %v1342
    %v1344 = vperm.slane %v592, %v1343
    %v1346 = vunpack.c.l.s4 269488144
    %v1347 = vunpack.c.0.s8 %v1346
    %v1348 = vperm.slane %v595, %v1347
    %v1350 = vunpack.c.l.s4 842150450
    %v1351 = vunpack.c.0.s8 %v1350
    %v1352 = vperm.slane %v595, %v1351
    %v1354 = vunpack.c.l.s4 1414812756
    %v1355 = vunpack.c.0.s8 %v1354
    %v1356 = vperm.slane %v595, %v1355
    %v1358 = vunpack.c.l.s4 1987475062
    %v1359 = vunpack.c.0.s8 %v1358
    %v1360 = vperm.slane %v595, %v1359
    %v1362 = vunpack.c.l.s4 269488144
    %v1363 = vunpack.c.0.s8 %v1362
    %v1364 = vperm.slane %v598, %v1363
    %v1366 = vunpack.c.l.s4 842150450
    %v1367 = vunpack.c.0.s8 %v1366
    %v1368 = vperm.slane %v598, %v1367
    %v1370 = vunpack.c.l.s4 1414812756
    %v1371 = vunpack.c.0.s8 %v1370
    %v1372 = vperm.slane %v598, %v1371
    %v1374 = vunpack.c.l.s4 1987475062
    %v1375 = vunpack.c.0.s8 %v1374
    %v1376 = vperm.slane %v598, %v1375
    %v1378 = vunpack.c.l.s4 269488144
    %v1379 = vunpack.c.0.s8 %v1378
    %v1380 = vperm.slane %v601, %v1379
    %v1382 = vunpack.c.l.s4 842150450
    %v1383 = vunpack.c.0.s8 %v1382
    %v1384 = vperm.slane %v601, %v1383
    %v1386 = vunpack.c.l.s4 1414812756
    %v1387 = vunpack.c.0.s8 %v1386
    %v1388 = vperm.slane %v601, %v1387
    %v1390 = vunpack.c.l.s4 1987475062
    %v1391 = vunpack.c.0.s8 %v1390
    %v1392 = vperm.slane %v601, %v1391
    %v1394 = vunpack.c.l.s4 269488144
    %v1395 = vunpack.c.0.s8 %v1394
    %v1396 = vperm.slane %v604, %v1395
    %v1398 = vunpack.c.l.s4 842150450
    %v1399 = vunpack.c.0.s8 %v1398
    %v1400 = vperm.slane %v604, %v1399
    %v1402 = vunpack.c.l.s4 1414812756
    %v1403 = vunpack.c.0.s8 %v1402
    %v1404 = vperm.slane %v604, %v1403
    %v1406 = vunpack.c.l.s4 1987475062
    %v1407 = vunpack.c.0.s8 %v1406
    %v1408 = vperm.slane %v604, %v1407
    %v1410 = vunpack.c.l.s4 269488144
    %v1411 = vunpack.c.0.s8 %v1410
    %v1412 = vperm.slane %v607, %v1411
    %v1414 = vunpack.c.l.s4 842150450
    %v1415 = vunpack.c.0.s8 %v1414
    %v1416 = vperm.slane %v607, %v1415
    %v1418 = vunpack.c.l.s4 1414812756
    %v1419 = vunpack.c.0.s8 %v1418
    %v1420 = vperm.slane %v607, %v1419
    %v1422 = vunpack.c.l.s4 1987475062
    %v1423 = vunpack.c.0.s8 %v1422
    %v1424 = vperm.slane %v607, %v1423
    %v1426 = vunpack.c.l.s4 269488144
    %v1427 = vunpack.c.0.s8 %v1426
    %v1428 = vperm.slane %v610, %v1427
    %v1430 = vunpack.c.l.s4 842150450
    %v1431 = vunpack.c.0.s8 %v1430
    %v1432 = vperm.slane %v610, %v1431
    %v1434 = vunpack.c.l.s4 1414812756
    %v1435 = vunpack.c.0.s8 %v1434
    %v1436 = vperm.slane %v610, %v1435
    %v1438 = vunpack.c.l.s4 1987475062
    %v1439 = vunpack.c.0.s8 %v1438
    %v1440 = vperm.slane %v610, %v1439
    %v1442 = vunpack.c.l.s4 269488144
    %v1443 = vunpack.c.0.s8 %v1442
    %v1444 = vperm.slane %v613, %v1443
    %v1446 = vunpack.c.l.s4 842150450
    %v1447 = vunpack.c.0.s8 %v1446
    %v1448 = vperm.slane %v613, %v1447
    %v1450 = vunpack.c.l.s4 1414812756
    %v1451 = vunpack.c.0.s8 %v1450
    %v1452 = vperm.slane %v613, %v1451
    %v1454 = vunpack.c.l.s4 1987475062
    %v1455 = vunpack.c.0.s8 %v1454
    %v1456 = vperm.slane %v613, %v1455
    %v1458 = vunpack.c.l.s4 269488144
    %v1459 = vunpack.c.0.s8 %v1458
    %v1460 = vperm.slane %v616, %v1459
    %v1462 = vunpack.c.l.s4 842150450
    %v1463 = vunpack.c.0.s8 %v1462
    %v1464 = vperm.slane %v616, %v1463
    %v1466 = vunpack.c.l.s4 1414812756
    %v1467 = vunpack.c.0.s8 %v1466
    %v1468 = vperm.slane %v616, %v1467
    %v1470 = vunpack.c.l.s4 1987475062
    %v1471 = vunpack.c.0.s8 %v1470
    %v1472 = vperm.slane %v616, %v1471
    %1473 = vst [vmem:[#allocation1] ss:$4 sm:$0xff] %v676
    %s1474 = scalar_lea.vmem [#allocation1], 1
    %1475 = vst [vmem:[%s1474] ss:$4 sm:$0xff] %v680
    %s1476 = scalar_lea.vmem [#allocation1], 2
    %1477 = vst [vmem:[%s1476] ss:$4 sm:$0xff] %v684
    %s1478 = scalar_lea.vmem [#allocation1], 3
    %1479 = vst [vmem:[%s1478] ss:$4 sm:$0xff] %v688
    %s1480 = scalar_lea.vmem [#allocation1], 32
    %1481 = vst [vmem:[%s1480] ss:$4 sm:$0xff] %v692
    %s1482 = scalar_lea.vmem [#allocation1], 33
    %1483 = vst [vmem:[%s1482] ss:$4 sm:$0xff] %v696
    %s1484 = scalar_lea.vmem [#allocation1], 34
    %1485 = vst [vmem:[%s1484] ss:$4 sm:$0xff] %v700
    %s1486 = scalar_lea.vmem [#allocation1], 35
    %1487 = vst [vmem:[%s1486] ss:$4 sm:$0xff] %v704
    %v1488 = vld.sshfl [vmem:[#allocation1] sm:$0xff pattern:$0x73625140]
    %v1489 = vld.sshfl [vmem:[#allocation1 + $0x20] sm:$0xff pattern:$0x73625140]
    %1490 = vst [vmem:[#allocation1] ss:$4 sm:$0xff] %v708
    %1491 = vst [vmem:[%s1474] ss:$4 sm:$0xff] %v712
    %1492 = vst [vmem:[%s1476] ss:$4 sm:$0xff] %v716
    %1493 = vst [vmem:[%s1478] ss:$4 sm:$0xff] %v720
    %1494 = vst [vmem:[%s1480] ss:$4 sm:$0xff] %v724
    %1495 = vst [vmem:[%s1482] ss:$4 sm:$0xff] %v728
    %1496 = vst [vmem:[%s1484] ss:$4 sm:$0xff] %v732
    %1497 = vst [vmem:[%s1486] ss:$4 sm:$0xff] %v736
    %v1498 = vld.sshfl [vmem:[#allocation1] sm:$0xff pattern:$0x73625140]
    %v1499 = vld.sshfl [vmem:[#allocation1 + $0x20] sm:$0xff pattern:$0x73625140]
    %1500 = vst [vmem:[#allocation1] ss:$4 sm:$0xff] %v740
    %1501 = vst [vmem:[%s1474] ss:$4 sm:$0xff] %v744
    %1502 = vst [vmem:[%s1476] ss:$4 sm:$0xff] %v748
    %1503 = vst [vmem:[%s1478] ss:$4 sm:$0xff] %v752
    %1504 = vst [vmem:[%s1480] ss:$4 sm:$0xff] %v756
    %1505 = vst [vmem:[%s1482] ss:$4 sm:$0xff] %v760
    %1506 = vst [vmem:[%s1484] ss:$4 sm:$0xff] %v764
    %1507 = vst [vmem:[%s1486] ss:$4 sm:$0xff] %v768
    %v1508 = vld.sshfl [vmem:[#allocation1] sm:$0xff pattern:$0x73625140]
    %v1509 = vld.sshfl [vmem:[#allocation1 + $0x20] sm:$0xff pattern:$0x73625140]
    %1510 = vst [vmem:[#allocation1] ss:$4 sm:$0xff] %v772
    %1511 = vst [vmem:[%s1474] ss:$4 sm:$0xff] %v776
    %1512 = vst [vmem:[%s1476] ss:$4 sm:$0xff] %v780
    %1513 = vst [vmem:[%s1478] ss:$4 sm:$0xff] %v784
    %1514 = vst [vmem:[%s1480] ss:$4 sm:$0xff] %v788
    %1515 = vst [vmem:[%s1482] ss:$4 sm:$0xff] %v792
    %1516 = vst [vmem:[%s1484] ss:$4 sm:$0xff] %v796
    %1517 = vst [vmem:[%s1486] ss:$4 sm:$0xff] %v800
    %v1518 = vld.sshfl [vmem:[#allocation1] sm:$0xff pattern:$0x73625140]
    %v1519 = vld.sshfl [vmem:[#allocation1 + $0x20] sm:$0xff pattern:$0x73625140]
    %1520 = vst [vmem:[#allocation1] ss:$4 sm:$0xff] %v804
    %1521 = vst [vmem:[%s1474] ss:$4 sm:$0xff] %v808
    %1522 = vst [vmem:[%s1476] ss:$4 sm:$0xff] %v812
    %1523 = vst [vmem:[%s1478] ss:$4 sm:$0xff] %v816
    %1524 = vst [vmem:[%s1480] ss:$4 sm:$0xff] %v820
    %1525 = vst [vmem:[%s1482] ss:$4 sm:$0xff] %v824
    %1526 = vst [vmem:[%s1484] ss:$4 sm:$0xff] %v828
    %1527 = vst [vmem:[%s1486] ss:$4 sm:$0xff] %v832
    %v1528 = vld.sshfl [vmem:[#allocation1] sm:$0xff pattern:$0x73625140]
    %v1529 = vld.sshfl [vmem:[#allocation1 + $0x20] sm:$0xff pattern:$0x73625140]
    %1530 = vst [vmem:[#allocation1] ss:$4 sm:$0xff] %v836
    %1531 = vst [vmem:[%s1474] ss:$4 sm:$0xff] %v840
    %1532 = vst [vmem:[%s1476] ss:$4 sm:$0xff] %v844
    %1533 = vst [vmem:[%s1478] ss:$4 sm:$0xff] %v848
    %1534 = vst [vmem:[%s1480] ss:$4 sm:$0xff] %v852
    %1535 = vst [vmem:[%s1482] ss:$4 sm:$0xff] %v856
    %1536 = vst [vmem:[%s1484] ss:$4 sm:$0xff] %v860
    %1537 = vst [vmem:[%s1486] ss:$4 sm:$0xff] %v864
    %v1538 = vld.sshfl [vmem:[#allocation1] sm:$0xff pattern:$0x73625140]
    %v1539 = vld.sshfl [vmem:[#allocation1 + $0x20] sm:$0xff pattern:$0x73625140]
    %1540 = vst [vmem:[#allocation1] ss:$4 sm:$0xff] %v868
    %1541 = vst [vmem:[%s1474] ss:$4 sm:$0xff] %v872
    %1542 = vst [vmem:[%s1476] ss:$4 sm:$0xff] %v876
    %1543 = vst [vmem:[%s1478] ss:$4 sm:$0xff] %v880
    %1544 = vst [vmem:[%s1480] ss:$4 sm:$0xff] %v884
    %1545 = vst [vmem:[%s1482] ss:$4 sm:$0xff] %v888
    %1546 = vst [vmem:[%s1484] ss:$4 sm:$0xff] %v892
    %1547 = vst [vmem:[%s1486] ss:$4 sm:$0xff] %v896
    %v1548 = vld.sshfl [vmem:[#allocation1] sm:$0xff pattern:$0x73625140]
    %v1549 = vld.sshfl [vmem:[#allocation1 + $0x20] sm:$0xff pattern:$0x73625140]
    %1550 = vst [vmem:[#allocation1] ss:$4 sm:$0xff] %v900
    %1551 = vst [vmem:[%s1474] ss:$4 sm:$0xff] %v904
    %1552 = vst [vmem:[%s1476] ss:$4 sm:$0xff] %v908
    %1553 = vst [vmem:[%s1478] ss:$4 sm:$0xff] %v912
    %1554 = vst [vmem:[%s1480] ss:$4 sm:$0xff] %v916
    %1555 = vst [vmem:[%s1482] ss:$4 sm:$0xff] %v920
    %1556 = vst [vmem:[%s1484] ss:$4 sm:$0xff] %v924
    %1557 = vst [vmem:[%s1486] ss:$4 sm:$0xff] %v928
    %v1558 = vld.sshfl [vmem:[#allocation1] sm:$0xff pattern:$0x73625140]
    %v1559 = vld.sshfl [vmem:[#allocation1 + $0x20] sm:$0xff pattern:$0x73625140]
    %1560 = vst [vmem:[#allocation1] ss:$4 sm:$0xff] %v932
    %1561 = vst [vmem:[%s1474] ss:$4 sm:$0xff] %v936
    %1562 = vst [vmem:[%s1476] ss:$4 sm:$0xff] %v940
    %1563 = vst [vmem:[%s1478] ss:$4 sm:$0xff] %v944
    %1564 = vst [vmem:[%s1480] ss:$4 sm:$0xff] %v948
    %1565 = vst [vmem:[%s1482] ss:$4 sm:$0xff] %v952
    %1566 = vst [vmem:[%s1484] ss:$4 sm:$0xff] %v956
    %1567 = vst [vmem:[%s1486] ss:$4 sm:$0xff] %v960
    %v1568 = vld.sshfl [vmem:[#allocation1] sm:$0xff pattern:$0x73625140]
    %v1569 = vld.sshfl [vmem:[#allocation1 + $0x20] sm:$0xff pattern:$0x73625140]
    %1570 = vst [vmem:[#allocation1] ss:$4 sm:$0xff] %v964
    %1571 = vst [vmem:[%s1474] ss:$4 sm:$0xff] %v968
    %1572 = vst [vmem:[%s1476] ss:$4 sm:$0xff] %v972
    %1573 = vst [vmem:[%s1478] ss:$4 sm:$0xff] %v976
    %1574 = vst [vmem:[%s1480] ss:$4 sm:$0xff] %v980
    %1575 = vst [vmem:[%s1482] ss:$4 sm:$0xff] %v984
    %1576 = vst [vmem:[%s1484] ss:$4 sm:$0xff] %v988
    %1577 = vst [vmem:[%s1486] ss:$4 sm:$0xff] %v992
    %v1578 = vld.sshfl [vmem:[#allocation1] sm:$0xff pattern:$0x73625140]
    %v1579 = vld.sshfl [vmem:[#allocation1 + $0x20] sm:$0xff pattern:$0x73625140]
    %1580 = vst [vmem:[#allocation1] ss:$4 sm:$0xff] %v996
    %1581 = vst [vmem:[%s1474] ss:$4 sm:$0xff] %v1000
    %1582 = vst [vmem:[%s1476] ss:$4 sm:$0xff] %v1004
    %1583 = vst [vmem:[%s1478] ss:$4 sm:$0xff] %v1008
    %1584 = vst [vmem:[%s1480] ss:$4 sm:$0xff] %v1012
    %1585 = vst [vmem:[%s1482] ss:$4 sm:$0xff] %v1016
    %1586 = vst [vmem:[%s1484] ss:$4 sm:$0xff] %v1020
    %1587 = vst [vmem:[%s1486] ss:$4 sm:$0xff] %v1024
    %v1588 = vld.sshfl [vmem:[#allocation1] sm:$0xff pattern:$0x73625140]
    %v1589 = vld.sshfl [vmem:[#allocation1 + $0x20] sm:$0xff pattern:$0x73625140]
    %1590 = vst [vmem:[#allocation1] ss:$4 sm:$0xff] %v1028
    %1591 = vst [vmem:[%s1474] ss:$4 sm:$0xff] %v1032
    %1592 = vst [vmem:[%s1476] ss:$4 sm:$0xff] %v1036
    %1593 = vst [vmem:[%s1478] ss:$4 sm:$0xff] %v1040
    %1594 = vst [vmem:[%s1480] ss:$4 sm:$0xff] %v1044
    %1595 = vst [vmem:[%s1482] ss:$4 sm:$0xff] %v1048
    %1596 = vst [vmem:[%s1484] ss:$4 sm:$0xff] %v1052
    %1597 = vst [vmem:[%s1486] ss:$4 sm:$0xff] %v1056
    %v1598 = vld.sshfl [vmem:[#allocation1] sm:$0xff pattern:$0x73625140]
    %v1599 = vld.sshfl [vmem:[#allocation1 + $0x20] sm:$0xff pattern:$0x73625140]
    %1600 = vst [vmem:[#allocation1] ss:$4 sm:$0xff] %v1060
    %1601 = vst [vmem:[%s1474] ss:$4 sm:$0xff] %v1064
    %1602 = vst [vmem:[%s1476] ss:$4 sm:$0xff] %v1068
    %1603 = vst [vmem:[%s1478] ss:$4 sm:$0xff] %v1072
    %v1604 = vld.sshfl [vmem:[#allocation1] sm:$0xff pattern:$0x73625140]
    %1605 = vst [vmem:[%s1480] ss:$4 sm:$0xff] %v1076
    %1606 = vst [vmem:[%s1482] ss:$4 sm:$0xff] %v1080
    %1607 = vst [vmem:[%s1484] ss:$4 sm:$0xff] %v1084
    %1608 = vst [vmem:[%s1486] ss:$4 sm:$0xff] %v1088
    %v1609 = vld.sshfl [vmem:[#allocation1 + $0x20] sm:$0xff pattern:$0x73625140]
    %1610 = vst [vmem:[#allocation1] ss:$4 sm:$0xff] %v1092
    %1611 = vst [vmem:[%s1474] ss:$4 sm:$0xff] %v1096
    %1612 = vst [vmem:[%s1476] ss:$4 sm:$0xff] %v1100
    %1613 = vst [vmem:[%s1478] ss:$4 sm:$0xff] %v1104
    %1614 = vst [vmem:[%s1480] ss:$4 sm:$0xff] %v1108
    %1615 = vst [vmem:[%s1482] ss:$4 sm:$0xff] %v1112
    %1616 = vst [vmem:[%s1484] ss:$4 sm:$0xff] %v1116
    %1617 = vst [vmem:[%s1486] ss:$4 sm:$0xff] %v1120
    %v1618 = vld.sshfl [vmem:[#allocation1] sm:$0xff pattern:$0x73625140]
    %v1619 = vld.sshfl [vmem:[#allocation1 + $0x20] sm:$0xff pattern:$0x73625140]
    %1620 = vst [vmem:[#allocation1] ss:$4 sm:$0xff] %v1124
    %1621 = vst [vmem:[%s1474] ss:$4 sm:$0xff] %v1128
    %1622 = vst [vmem:[%s1476] ss:$4 sm:$0xff] %v1132
    %1623 = vst [vmem:[%s1478] ss:$4 sm:$0xff] %v1136
    %1624 = vst [vmem:[%s1480] ss:$4 sm:$0xff] %v1140
    %1625 = vst [vmem:[%s1482] ss:$4 sm:$0xff] %v1144
    %1626 = vst [vmem:[%s1484] ss:$4 sm:$0xff] %v1148
    %1627 = vst [vmem:[%s1486] ss:$4 sm:$0xff] %v1152
    %v1628 = vld.sshfl [vmem:[#allocation1] sm:$0xff pattern:$0x73625140]
    %v1629 = vld.sshfl [vmem:[#allocation1 + $0x20] sm:$0xff pattern:$0x73625140]
    %1630 = vst [vmem:[#allocation1] ss:$4 sm:$0xff] %v1156
    %1631 = vst [vmem:[%s1474] ss:$4 sm:$0xff] %v1160
    %1632 = vst [vmem:[%s1476] ss:$4 sm:$0xff] %v1164
    %1633 = vst [vmem:[%s1478] ss:$4 sm:$0xff] %v1168
    %1634 = vst [vmem:[%s1480] ss:$4 sm:$0xff] %v1172
    %1635 = vst [vmem:[%s1482] ss:$4 sm:$0xff] %v1176
    %1636 = vst [vmem:[%s1484] ss:$4 sm:$0xff] %v1180
    %1637 = vst [vmem:[%s1486] ss:$4 sm:$0xff] %v1184
    %v1638 = vld.sshfl [vmem:[#allocation1] sm:$0xff pattern:$0x73625140]
    %v1639 = vld.sshfl [vmem:[#allocation1 + $0x20] sm:$0xff pattern:$0x73625140]
    %1640 = vst [vmem:[#allocation1] ss:$4 sm:$0xff] %v1188
    %1641 = vst [vmem:[%s1474] ss:$4 sm:$0xff] %v1192
    %1642 = vst [vmem:[%s1476] ss:$4 sm:$0xff] %v1196
    %1643 = vst [vmem:[%s1478] ss:$4 sm:$0xff] %v1200
    %1644 = vst [vmem:[%s1480] ss:$4 sm:$0xff] %v1204
    %1645 = vst [vmem:[%s1482] ss:$4 sm:$0xff] %v1208
    %1646 = vst [vmem:[%s1484] ss:$4 sm:$0xff] %v1212
    %1647 = vst [vmem:[%s1486] ss:$4 sm:$0xff] %v1216
    %v1648 = vld.sshfl [vmem:[#allocation1] sm:$0xff pattern:$0x73625140]
    %v1649 = vld.sshfl [vmem:[#allocation1 + $0x20] sm:$0xff pattern:$0x73625140]
    %1650 = vst [vmem:[#allocation1] ss:$4 sm:$0xff] %v1220
    %1651 = vst [vmem:[%s1474] ss:$4 sm:$0xff] %v1224
    %1652 = vst [vmem:[%s1476] ss:$4 sm:$0xff] %v1228
    %1653 = vst [vmem:[%s1478] ss:$4 sm:$0xff] %v1232
    %1654 = vst [vmem:[%s1480] ss:$4 sm:$0xff] %v1236
    %1655 = vst [vmem:[%s1482] ss:$4 sm:$0xff] %v1240
    %1656 = vst [vmem:[%s1484] ss:$4 sm:$0xff] %v1244
    %1657 = vst [vmem:[%s1486] ss:$4 sm:$0xff] %v1248
    %v1658 = vld.sshfl [vmem:[#allocation1] sm:$0xff pattern:$0x73625140]
    %v1659 = vld.sshfl [vmem:[#allocation1 + $0x20] sm:$0xff pattern:$0x73625140]
    %1660 = vst [vmem:[#allocation1] ss:$4 sm:$0xff] %v1252
    %1661 = vst [vmem:[%s1474] ss:$4 sm:$0xff] %v1256
    %1662 = vst [vmem:[%s1476] ss:$4 sm:$0xff] %v1260
    %1663 = vst [vmem:[%s1478] ss:$4 sm:$0xff] %v1264
    %1664 = vst [vmem:[%s1480] ss:$4 sm:$0xff] %v1268
    %1665 = vst [vmem:[%s1482] ss:$4 sm:$0xff] %v1272
    %1666 = vst [vmem:[%s1484] ss:$4 sm:$0xff] %v1276
    %1667 = vst [vmem:[%s1486] ss:$4 sm:$0xff] %v1280
    %v1668 = vld.sshfl [vmem:[#allocation1] sm:$0xff pattern:$0x73625140]
    %v1669 = vld.sshfl [vmem:[#allocation1 + $0x20] sm:$0xff pattern:$0x73625140]
    %1670 = vst [vmem:[#allocation1] ss:$4 sm:$0xff] %v1284
    %1671 = vst [vmem:[%s1474] ss:$4 sm:$0xff] %v1288
    %1672 = vst [vmem:[%s1476] ss:$4 sm:$0xff] %v1292
    %1673 = vst [vmem:[%s1478] ss:$4 sm:$0xff] %v1296
    %1674 = vst [vmem:[%s1480] ss:$4 sm:$0xff] %v1300
    %1675 = vst [vmem:[%s1482] ss:$4 sm:$0xff] %v1304
    %1676 = vst [vmem:[%s1484] ss:$4 sm:$0xff] %v1308
    %1677 = vst [vmem:[%s1486] ss:$4 sm:$0xff] %v1312
    %v1678 = vld.sshfl [vmem:[#allocation1] sm:$0xff pattern:$0x73625140]
    %v1679 = vld.sshfl [vmem:[#allocation1 + $0x20] sm:$0xff pattern:$0x73625140]
    %1680 = vst [vmem:[#allocation1] ss:$4 sm:$0xff] %v1316
    %1681 = vst [vmem:[%s1474] ss:$4 sm:$0xff] %v1320
    %1682 = vst [vmem:[%s1476] ss:$4 sm:$0xff] %v1324
    %1683 = vst [vmem:[%s1478] ss:$4 sm:$0xff] %v1328
    %1684 = vst [vmem:[%s1480] ss:$4 sm:$0xff] %v1332
    %1685 = vst [vmem:[%s1482] ss:$4 sm:$0xff] %v1336
    %1686 = vst [vmem:[%s1484] ss:$4 sm:$0xff] %v1340
    %1687 = vst [vmem:[%s1486] ss:$4 sm:$0xff] %v1344
    %v1688 = vld.sshfl [vmem:[#allocation1] sm:$0xff pattern:$0x73625140]
    %v1689 = vld.sshfl [vmem:[#allocation1 + $0x20] sm:$0xff pattern:$0x73625140]
    %1690 = vst [vmem:[#allocation1] ss:$4 sm:$0xff] %v1348
    %1691 = vst [vmem:[%s1474] ss:$4 sm:$0xff] %v1352
    %1692 = vst [vmem:[%s1476] ss:$4 sm:$0xff] %v1356
    %1693 = vst [vmem:[%s1478] ss:$4 sm:$0xff] %v1360
    %1694 = vst [vmem:[%s1480] ss:$4 sm:$0xff] %v1364
    %1695 = vst [vmem:[%s1482] ss:$4 sm:$0xff] %v1368
    %1696 = vst [vmem:[%s1484] ss:$4 sm:$0xff] %v1372
    %1697 = vst [vmem:[%s1486] ss:$4 sm:$0xff] %v1376
    %v1698 = vld.sshfl [vmem:[#allocation1] sm:$0xff pattern:$0x73625140]
    %v1699 = vld.sshfl [vmem:[#allocation1 + $0x20] sm:$0xff pattern:$0x73625140]
    %1700 = vst [vmem:[#allocation1] ss:$4 sm:$0xff] %v1380
    %1701 = vst [vmem:[%s1474] ss:$4 sm:$0xff] %v1384
    %1702 = vst [vmem:[%s1476] ss:$4 sm:$0xff] %v1388
    %1703 = vst [vmem:[%s1478] ss:$4 sm:$0xff] %v1392
    %1704 = vst [vmem:[%s1480] ss:$4 sm:$0xff] %v1396
    %1705 = vst [vmem:[%s1482] ss:$4 sm:$0xff] %v1400
    %1706 = vst [vmem:[%s1484] ss:$4 sm:$0xff] %v1404
    %1707 = vst [vmem:[%s1486] ss:$4 sm:$0xff] %v1408
    %v1708 = vld.sshfl [vmem:[#allocation1] sm:$0xff pattern:$0x73625140]
    %v1709 = vld.sshfl [vmem:[#allocation1 + $0x20] sm:$0xff pattern:$0x73625140]
    %1710 = vst [vmem:[#allocation1] ss:$4 sm:$0xff] %v1412
    %1711 = vst [vmem:[%s1474] ss:$4 sm:$0xff] %v1416
    %1712 = vst [vmem:[%s1476] ss:$4 sm:$0xff] %v1420
    %1713 = vst [vmem:[%s1478] ss:$4 sm:$0xff] %v1424
    %1714 = vst [vmem:[%s1480] ss:$4 sm:$0xff] %v1428
    %1715 = vst [vmem:[%s1482] ss:$4 sm:$0xff] %v1432
    %1716 = vst [vmem:[%s1484] ss:$4 sm:$0xff] %v1436
    %1717 = vst [vmem:[%s1486] ss:$4 sm:$0xff] %v1440
    %v1718 = vld.sshfl [vmem:[#allocation1] sm:$0xff pattern:$0x73625140]
    %v1719 = vld.sshfl [vmem:[#allocation1 + $0x20] sm:$0xff pattern:$0x73625140]
    %1720 = vst [vmem:[#allocation1] ss:$4 sm:$0xff] %v1444
    %1721 = vst [vmem:[%s1474] ss:$4 sm:$0xff] %v1448
    %1722 = vst [vmem:[%s1476] ss:$4 sm:$0xff] %v1452
    %1723 = vst [vmem:[%s1478] ss:$4 sm:$0xff] %v1456
    %1724 = vst [vmem:[%s1480] ss:$4 sm:$0xff] %v1460
    %1725 = vst [vmem:[%s1482] ss:$4 sm:$0xff] %v1464
    %1726 = vst [vmem:[%s1484] ss:$4 sm:$0xff] %v1468
    %1727 = vst [vmem:[%s1486] ss:$4 sm:$0xff] %v1472
    %v1728 = vld.sshfl [vmem:[#allocation1] sm:$0xff pattern:$0x73625140]
    %v1729 = vld.sshfl [vmem:[#allocation1 + $0x20] sm:$0xff pattern:$0x73625140]
    %1730 = vset.pattern.permute.xlu0 0
    %1731 = vperm.xlu0 %1730, %v1488
    %v1732 = vpop.permute.xlu0 %1731
    %1733 = vset.pattern.permute.xlu0 0
    %1734 = vperm.xlu0 %1733, %v1489
    %v1735 = vpop.permute.xlu0 %1734
    %1736 = vset.pattern.permute.xlu0 0
    %1737 = vperm.xlu0 %1736, %v1498
    %v1738 = vpop.permute.xlu0 %1737
    %1739 = vset.pattern.permute.xlu0 0
    %1740 = vperm.xlu0 %1739, %v1499
    %v1741 = vpop.permute.xlu0 %1740
    %1742 = vset.pattern.permute.xlu0 0
    %1743 = vperm.xlu0 %1742, %v1508
    %v1744 = vpop.permute.xlu0 %1743
    %1745 = vset.pattern.permute.xlu0 0
    %1746 = vperm.xlu0 %1745, %v1509
    %v1747 = vpop.permute.xlu0 %1746
    %1748 = vset.pattern.permute.xlu0 0
    %1749 = vperm.xlu0 %1748, %v1518
    %v1750 = vpop.permute.xlu0 %1749
    %1751 = vset.pattern.permute.xlu0 0
    %1752 = vperm.xlu0 %1751, %v1519
    %v1753 = vpop.permute.xlu0 %1752
    %1754 = vset.pattern.permute.xlu0 0
    %1755 = vperm.xlu0 %1754, %v1528
    %v1756 = vpop.permute.xlu0 %1755
    %1757 = vset.pattern.permute.xlu0 0
    %1758 = vperm.xlu0 %1757, %v1529
    %v1759 = vpop.permute.xlu0 %1758
    %1760 = vset.pattern.permute.xlu0 0
    %1761 = vperm.xlu0 %1760, %v1538
    %v1762 = vpop.permute.xlu0 %1761
    %1763 = vset.pattern.permute.xlu0 0
    %1764 = vperm.xlu0 %1763, %v1539
    %v1765 = vpop.permute.xlu0 %1764
    %1766 = vset.pattern.permute.xlu0 0
    %1767 = vperm.xlu0 %1766, %v1548
    %v1768 = vpop.permute.xlu0 %1767
    %1769 = vset.pattern.permute.xlu0 0
    %1770 = vperm.xlu0 %1769, %v1549
    %v1771 = vpop.permute.xlu0 %1770
    %1772 = vset.pattern.permute.xlu0 0
    %1773 = vperm.xlu0 %1772, %v1558
    %v1774 = vpop.permute.xlu0 %1773
    %1775 = vset.pattern.permute.xlu0 0
    %1776 = vperm.xlu0 %1775, %v1559
    %v1777 = vpop.permute.xlu0 %1776
    %1778 = vset.pattern.permute.xlu0 0
    %1779 = vperm.xlu0 %1778, %v1568
    %v1780 = vpop.permute.xlu0 %1779
    %1781 = vset.pattern.permute.xlu0 0
    %1782 = vperm.xlu0 %1781, %v1569
    %v1783 = vpop.permute.xlu0 %1782
    %1784 = vset.pattern.permute.xlu0 0
    %1785 = vperm.xlu0 %1784, %v1578
    %v1786 = vpop.permute.xlu0 %1785
    %1787 = vset.pattern.permute.xlu0 0
    %1788 = vperm.xlu0 %1787, %v1579
    %v1789 = vpop.permute.xlu0 %1788
    %1790 = vset.pattern.permute.xlu0 0
    %1791 = vperm.xlu0 %1790, %v1588
    %v1792 = vpop.permute.xlu0 %1791
    %1793 = vset.pattern.permute.xlu0 0
    %1794 = vperm.xlu0 %1793, %v1589
    %v1795 = vpop.permute.xlu0 %1794
    %1796 = vset.pattern.permute.xlu0 0
    %1797 = vperm.xlu0 %1796, %v1598
    %v1798 = vpop.permute.xlu0 %1797
    %1799 = vset.pattern.permute.xlu0 0
    %1800 = vperm.xlu0 %1799, %v1599
    %v1801 = vpop.permute.xlu0 %1800
    %1802 = vset.pattern.permute.xlu0 0
    %1803 = vperm.xlu0 %1802, %v1604
    %v1804 = vpop.permute.xlu0 %1803
    %1805 = vset.pattern.permute.xlu0 0
    %1806 = vperm.xlu0 %1805, %v1609
    %v1807 = vpop.permute.xlu0 %1806
    %1808 = vset.pattern.permute.xlu0 0
    %1809 = vperm.xlu0 %1808, %v1618
    %v1810 = vpop.permute.xlu0 %1809
    %1811 = vset.pattern.permute.xlu0 0
    %1812 = vperm.xlu0 %1811, %v1619
    %v1813 = vpop.permute.xlu0 %1812
    %1814 = vset.pattern.permute.xlu0 0
    %1815 = vperm.xlu0 %1814, %v1628
    %v1816 = vpop.permute.xlu0 %1815
    %1817 = vset.pattern.permute.xlu0 0
    %1818 = vperm.xlu0 %1817, %v1629
    %v1819 = vpop.permute.xlu0 %1818
    %1820 = vset.pattern.permute.xlu0 0
    %1821 = vperm.xlu0 %1820, %v1638
    %v1822 = vpop.permute.xlu0 %1821
    %1823 = vset.pattern.permute.xlu0 0
    %1824 = vperm.xlu0 %1823, %v1639
    %v1825 = vpop.permute.xlu0 %1824
    %1826 = vset.pattern.permute.xlu0 0
    %1827 = vperm.xlu0 %1826, %v1648
    %v1828 = vpop.permute.xlu0 %1827
    %1829 = vset.pattern.permute.xlu0 0
    %1830 = vperm.xlu0 %1829, %v1649
    %v1831 = vpop.permute.xlu0 %1830
    %1832 = vset.pattern.permute.xlu0 0
    %1833 = vperm.xlu0 %1832, %v1658
    %v1834 = vpop.permute.xlu0 %1833
    %1835 = vset.pattern.permute.xlu0 0
    %1836 = vperm.xlu0 %1835, %v1659
    %v1837 = vpop.permute.xlu0 %1836
    %1838 = vset.pattern.permute.xlu0 0
    %1839 = vperm.xlu0 %1838, %v1668
    %v1840 = vpop.permute.xlu0 %1839
    %1841 = vset.pattern.permute.xlu0 0
    %1842 = vperm.xlu0 %1841, %v1669
    %v1843 = vpop.permute.xlu0 %1842
    %1844 = vset.pattern.permute.xlu0 0
    %1845 = vperm.xlu0 %1844, %v1678
    %v1846 = vpop.permute.xlu0 %1845
    %1847 = vset.pattern.permute.xlu0 0
    %1848 = vperm.xlu0 %1847, %v1679
    %v1849 = vpop.permute.xlu0 %1848
    %1850 = vset.pattern.permute.xlu0 0
    %1851 = vperm.xlu0 %1850, %v1688
    %v1852 = vpop.permute.xlu0 %1851
    %1853 = vset.pattern.permute.xlu0 0
    %1854 = vperm.xlu0 %1853, %v1689
    %v1855 = vpop.permute.xlu0 %1854
    %1856 = vset.pattern.permute.xlu0 0
    %1857 = vperm.xlu0 %1856, %v1698
    %v1858 = vpop.permute.xlu0 %1857
    %1859 = vset.pattern.permute.xlu0 0
    %1860 = vperm.xlu0 %1859, %v1699
    %v1861 = vpop.permute.xlu0 %1860
    %1862 = vset.pattern.permute.xlu0 0
    %1863 = vperm.xlu0 %1862, %v1708
    %v1864 = vpop.permute.xlu0 %1863
    %1865 = vset.pattern.permute.xlu0 0
    %1866 = vperm.xlu0 %1865, %v1709
    %v1867 = vpop.permute.xlu0 %1866
    %1868 = vset.pattern.permute.xlu0 0
    %1869 = vperm.xlu0 %1868, %v1718
    %v1870 = vpop.permute.xlu0 %1869
    %1871 = vset.pattern.permute.xlu0 0
    %1872 = vperm.xlu0 %1871, %v1719
    %v1873 = vpop.permute.xlu0 %1872
    %1874 = vset.pattern.permute.xlu0 0
    %1875 = vperm.xlu0 %1874, %v1728
    %v1876 = vpop.permute.xlu0 %1875
    %1877 = vset.pattern.permute.xlu0 0
    %1878 = vperm.xlu0 %1877, %v1729
    %v1879 = vpop.permute.xlu0 %1878
    %v1880 = vperm.slane %v1732, %v196
    %v1881 = vadd.s32 %v196, 4294967288
    %v1882 = vperm.slane %v1735, %v1881
    %vm1883 = vcmask 130112
    %v1884 = vsel %vm1883, %v1882, %v1880
    %v1885 = vadd.s32 %v196, 4294967280
    %v1886 = vperm.slane %v1738, %v1885
    %vm1887 = vcmask 195712
    %v1888 = vsel %vm1887, %v1886, %v1884
    %v1889 = vadd.s32 %v196, 4294967272
    %v1890 = vperm.slane %v1741, %v1889
    %vm1891 = vcmask 261312
    %v1892 = vsel %vm1891, %v1890, %v1888
    %v1893 = vadd.s32 %v196, 4294967264
    %v1894 = vperm.slane %v1744, %v1893
    %vm1895 = vcmask 326912
    %v1896 = vsel %vm1895, %v1894, %v1892
    %v1897 = vadd.s32 %v196, 4294967256
    %v1898 = vperm.slane %v1747, %v1897
    %vm1899 = vcmask 392512
    %v1900 = vsel %vm1899, %v1898, %v1896
    %v1901 = vadd.s32 %v196, 4294967248
    %v1902 = vperm.slane %v1750, %v1901
    %vm1903 = vcmask 458112
    %v1904 = vsel %vm1903, %v1902, %v1900
    %v1905 = vadd.s32 %v196, 4294967240
    %v1906 = vperm.slane %v1753, %v1905
    %vm1907 = vcmask 523712
    %v1908 = vsel %vm1907, %v1906, %v1904
    %v1909 = vadd.s32 %v196, 4294967232
    %v1910 = vperm.slane %v1756, %v1909
    %vm1911 = vcmask 589312
    %v1912 = vsel %vm1911, %v1910, %v1908
    %v1913 = vadd.s32 %v196, 4294967224
    %v1914 = vperm.slane %v1759, %v1913
    %vm1915 = vcmask 654912
    %v1916 = vsel %vm1915, %v1914, %v1912
    %v1917 = vadd.s32 %v196, 4294967216
    %v1918 = vperm.slane %v1762, %v1917
    %vm1919 = vcmask 720512
    %v1920 = vsel %vm1919, %v1918, %v1916
    %v1921 = vadd.s32 %v196, 4294967208
    %v1922 = vperm.slane %v1765, %v1921
    %vm1923 = vcmask 786112
    %v1924 = vsel %vm1923, %v1922, %v1920
    %v1925 = vadd.s32 %v196, 4294967200
    %v1926 = vperm.slane %v1768, %v1925
    %vm1927 = vcmask 851712
    %v1928 = vsel %vm1927, %v1926, %v1924
    %v1929 = vadd.s32 %v196, 4294967192
    %v1930 = vperm.slane %v1771, %v1929
    %vm1931 = vcmask 917312
    %v1932 = vsel %vm1931, %v1930, %v1928
    %v1933 = vadd.s32 %v196, 4294967184
    %v1934 = vperm.slane %v1774, %v1933
    %vm1935 = vcmask 982912
    %v1936 = vsel %vm1935, %v1934, %v1932
    %v1937 = vadd.s32 %v196, 4294967176
    %v1938 = vperm.slane %v1777, %v1937
    %vm1939 = vcmask 1048512
    %v1940 = vsel %vm1939, %v1938, %v1936
    %v1941 = vperm.slane %v1780, %v196
    %v1942 = vperm.slane %v1783, %v1881
    %v1943 = vsel %vm1883, %v1942, %v1941
    %v1944 = vperm.slane %v1786, %v1885
    %v1945 = vsel %vm1887, %v1944, %v1943
    %v1946 = vperm.slane %v1789, %v1889
    %v1947 = vsel %vm1891, %v1946, %v1945
    %v1948 = vperm.slane %v1792, %v1893
    %v1949 = vsel %vm1895, %v1948, %v1947
    %v1950 = vperm.slane %v1795, %v1897
    %v1951 = vsel %vm1899, %v1950, %v1949
    %v1952 = vperm.slane %v1798, %v1901
    %v1953 = vsel %vm1903, %v1952, %v1951
    %v1954 = vperm.slane %v1801, %v1905
    %v1955 = vsel %vm1907, %v1954, %v1953
    %v1956 = vperm.slane %v1804, %v1909
    %v1957 = vsel %vm1911, %v1956, %v1955
    %v1958 = vperm.slane %v1807, %v196
    %v1959 = vperm.slane %v1810, %v1881
    %v1960 = vsel %vm1883, %v1959, %v1958
    %v1961 = vperm.slane %v1813, %v1885
    %v1962 = vsel %vm1887, %v1961, %v1960
    %v1963 = vperm.slane %v1816, %v1889
    %v1964 = vsel %vm1891, %v1963, %v1962
    %v1965 = vperm.slane %v1819, %v1893
    %v1966 = vsel %vm1895, %v1965, %v1964
    %v1967 = vperm.slane %v1822, %v1897
    %v1968 = vsel %vm1899, %v1967, %v1966
    %v1969 = vperm.slane %v1825, %v1901
    %v1970 = vsel %vm1903, %v1969, %v1968
    %v1971 = vperm.slane %v1828, %v1905
    %v1972 = vsel %vm1907, %v1971, %v1970
    %v1973 = vperm.slane %v1831, %v1909
    %v1974 = vsel %vm1911, %v1973, %v1972
    %v1975 = vperm.slane %v1834, %v1913
    %v1976 = vsel %vm1915, %v1975, %v1974
    %v1977 = vperm.slane %v1837, %v1917
    %v1978 = vsel %vm1919, %v1977, %v1976
    %v1979 = vperm.slane %v1840, %v1921
    %v1980 = vsel %vm1923, %v1979, %v1978
    %v1981 = vperm.slane %v1843, %v1925
    %v1982 = vsel %vm1927, %v1981, %v1980
    %v1983 = vperm.slane %v1846, %v1929
    %v1984 = vsel %vm1931, %v1983, %v1982
    %v1985 = vperm.slane %v1849, %v1933
    %v1986 = vsel %vm1935, %v1985, %v1984
    %v1987 = vperm.slane %v1852, %v1937
    %v1988 = vsel %vm1939, %v1987, %v1986
    %v1989 = vperm.slane %v1855, %v196
    %v1990 = vperm.slane %v1858, %v1881
    %v1991 = vsel %vm1883, %v1990, %v1989
    %v1992 = vperm.slane %v1861, %v1885
    %v1993 = vsel %vm1887, %v1992, %v1991
    %v1994 = vperm.slane %v1864, %v1889
    %v1995 = vsel %vm1891, %v1994, %v1993
    %v1996 = vperm.slane %v1867, %v1893
    %v1997 = vsel %vm1895, %v1996, %v1995
    %v1998 = vperm.slane %v1870, %v1897
    %v1999 = vsel %vm1899, %v1998, %v1997
    %v2000 = vperm.slane %v1873, %v1901
    %v2001 = vsel %vm1903, %v2000, %v1999
    %v2002 = vperm.slane %v1876, %v1905
    %v2003 = vsel %vm1907, %v2002, %v2001
    %v2004 = vperm.slane %v1879, %v1909
    %v2005 = vsel %vm1911, %v2004, %v2003
    %vm2006 = vcmask 1041409
    %v2007 = vsel %vm2006, %v1988, %v1940
    %v2008 = vsel %vm2006, %v2005, %v1957
    %v2009 = vrot.slane %v2008, 6
    %v2010 = vsel %vm262, %v2007, %v2009
    %v2012 = vsel %vm265, %v2010, 0.0
    %2014 = vst [vmem:[#allocation1] ss:$4 sm:$0xff] %v2012
    %v2015 = vld.sshfl [vmem:[#allocation1] sm:$0xff pattern:$0x73625140]
    %v2016 = vld.sshfl [vmem:[#allocation1 + $0x8] sm:$0xff pattern:$0x73625140]
    %v2019 = vsel %vm262, %v2015, 0.0
    %vm2020 = vcmask 582656
    %v2021 = vsel %vm2020, %v2016, 0.0
    %v2022 = vadd.f32 %v2019, %v2021
    %2023 = vadd.xlane.f32.xlu0 %v2022
    %v2024 = vpop.xlane.xlu0 %2023
    %v2025 = vsel %vm262, %v2024, 0.0
    %v2026 = vrot.slane %v2025, 4
    %v2027 = vadd.f32 %v2025, %v2026
    %v2028 = vrot.slane %v2027, 2
    %v2029 = vadd.f32 %v2027, %v2028
    %v2030 = vrot.slane %v2029, 1
    %v2031 = vadd.f32 %v2029, %v2030
    %v2032 = vsel %vm265, 1, 0
    %v2033 = vcvt.s32.f32 %v2032
    %2035 = vst [vmem:[#allocation1] ss:$4 sm:$0xff] %v2033
    %v2036 = vld.sshfl [vmem:[#allocation1] sm:$0xff pattern:$0x73625140]
    %v2037 = vld.sshfl [vmem:[#allocation1 + $0x8] sm:$0xff pattern:$0x73625140]
    %v2040 = vsel %vm262, %v2036, 0.0
    %v2041 = vsel %vm2020, %v2037, 0.0
    %v2042 = vadd.f32 %v2040, %v2041
    %2043 = vadd.xlane.f32.xlu0 %v2042
    %v2044 = vpop.xlane.xlu0 %2043
    %v2045 = vsel %vm262, %v2044, 0.0
    %v2046 = vrot.slane %v2045, 4
    %v2047 = vadd.f32 %v2045, %v2046
    %v2048 = vrot.slane %v2047, 2
    %v2049 = vadd.f32 %v2047, %v2048
    %v2050 = vrot.slane %v2049, 1
    %v2051 = vadd.f32 %v2049, %v2050
    %v2052 = vmul.f32 %v619, %v619
    %v2053 = vsel %vm265, %v2052, 0.0
    %2055 = vst [vmem:[#allocation1] ss:$4 sm:$0xff] %v2053
    %v2056 = vld.sshfl [vmem:[#allocation1] sm:$0xff pattern:$0x73625140]
    %v2057 = vld.sshfl [vmem:[#allocation1 + $0x8] sm:$0xff pattern:$0x73625140]
    %v2060 = vsel %vm262, %v2056, 0.0
    %v2061 = vsel %vm2020, %v2057, 0.0
    %v2062 = vadd.f32 %v2060, %v2061
    %2063 = vadd.xlane.f32.xlu0 %v2062
    %v2064 = vpop.xlane.xlu0 %2063
    %v2065 = vsel %vm262, %v2064, 0.0
    %v2066 = vrot.slane %v2065, 4
    %v2067 = vadd.f32 %v2065, %v2066
    %v2068 = vrot.slane %v2067, 2
    %v2069 = vadd.f32 %v2067, %v2068
    %v2070 = vrot.slane %v2069, 1
    %v2071 = vadd.f32 %v2069, %v2070
    %v2072 = vmul.f32 %v622, %v622
    %v2073 = vsel %vm265, %v2072, 0.0
    %2075 = vst [vmem:[#allocation1] ss:$4 sm:$0xff] %v2073
    %v2076 = vld.sshfl [vmem:[#allocation1] sm:$0xff pattern:$0x73625140]
    %v2077 = vld.sshfl [vmem:[#allocation1 + $0x8] sm:$0xff pattern:$0x73625140]
    %v2080 = vsel %vm262, %v2076, 0.0
    %v2081 = vsel %vm2020, %v2077, 0.0
    %v2082 = vadd.f32 %v2080, %v2081
    %2083 = vadd.xlane.f32.xlu0 %v2082
    %v2084 = vpop.xlane.xlu0 %2083
    %v2085 = vsel %vm262, %v2084, 0.0
    %v2086 = vrot.slane %v2085, 4
    %v2087 = vadd.f32 %v2085, %v2086
    %v2088 = vrot.slane %v2087, 2
    %v2089 = vadd.f32 %v2087, %v2088
    %v2090 = vrot.slane %v2089, 1
    %v2091 = vadd.f32 %v2089, %v2090
    %vm2092 = vcmp.eq.s32.totalorder %v196, 0
    %v2093 = vsel %vm2092, %v2031, 0.0
    %vm2094 = vcmp.eq.s32.totalorder %v196, 1
    %v2095 = vsel %vm2094, %v2051, 0.0
    %v2096 = vadd.f32 %v2093, %v2095
    %vm2097 = vcmp.eq.s32.totalorder %v196, 2
    %v2098 = vsel %vm2097, %v2071, 0.0
    %v2099 = vadd.f32 %v2096, %v2098
    %vm2100 = vcmp.eq.s32.totalorder %v196, 3
    %v2101 = vsel %vm2100, %v2091, 0.0
    %v2102 = vadd.f32 %v2099, %v2101
    %v2103 = vld [vmem:[#allocation2] sm:$0x1]
    %v2104 = vadd.f32 %v2103, %v2102
    %2105 = vst [vmem:[#allocation2] sm:$0x1] %v2104
    // Predicated region
    $region50: #{tpu_custom_call.1} parent=1 // pred_check
      _
    $region51: #{tpu_custom_call.1} parent=1 // pred_check_branch
      %2107 = sbr.rel (0) target = $region53
    $region52: #{tpu_custom_call.1} parent=1 // pred_region
      %2109 = vsyncadd [#allocation3], 0
      %s2111 = sshll.u32 [#allocation2], 4
      %s2112 = int_to_ptr.vmem [resolvable:$true] %s2111
      %s2113 = sshll.u32 %s10, 4
      %s2114 = int_to_ptr.hbm [resolvable:$true] %s2113
      %2116 = dma.vmem_to_hbm [thread:$0]  %s2112, 16, %s2114, [#allocation3]
    $region53: #{tpu_custom_call.1} parent=1 // pred_fallthru
      _
    // Predicated region
    $region54: #{tpu_custom_call.1} parent=1 // pred_check
      _
    $region55: #{tpu_custom_call.1} parent=1 // pred_check_branch
      %2118 = sbr.rel (0) target = $region57
    $region56: #{tpu_custom_call.1} parent=1 // pred_region
      %2120 = dma.done [#allocation3], 16
    $region57: #{tpu_custom_call.1} parent=1 // pred_fallthru
      _
    %2121 = vsyncpa [#allocation3], 1

</llo_original>
